<compile_context>
chip_gen: v7x
topology: tpu7x:2x2x1
jax: 0.10.0
libtpu: 0.0.40
codegen_flags: <defaults>
</compile_context>

<pallas_src>
import jax
import jax.numpy as jnp
from jax import lax
from jax.experimental import pallas as pl
from jax.experimental.pallas import tpu as pltpu

MIN_ = 0.6
MAX_ = 0.8
KH = KW = 4
STRIDE = 2
PAD = 1


def _make_kernel(H, W, Ho, Wo):
    """out = clip(bias + sum_ki A_ki @ x @ B_ki, MIN_, MAX_) — see header."""

    def kernel(x_ref, w_ref, b_ref, o_ref):
        # x_ref: (H, W)   raw image (VMEM)      w_ref: (KH, KW) SMEM scalars
        # b_ref: (1,)     SMEM scalar           o_ref: (Ho, Wo) output (VMEM)
        #
        # Row-tap index grid: s[i, r] = r - 2*i; vertical tap ki hits r = 2*i + ki - PAD.
        i_idx = lax.broadcasted_iota(jnp.int32, (Ho, H), 0)
        r_idx = lax.broadcasted_iota(jnp.int32, (Ho, H), 1)
        s = r_idx - STRIDE * i_idx
        # Column-tap index grid: d[c, j] = c - 2*j; horizontal tap kj hits c = 2*j + kj - PAD.
        c_idx = lax.broadcasted_iota(jnp.int32, (W, Wo), 0)
        j_idx = lax.broadcasted_iota(jnp.int32, (W, Wo), 1)
        d = c_idx - STRIDE * j_idx

        acc = jnp.full((Ho, Wo), b_ref[0], dtype=jnp.float32)
        for ki in range(KH):
            # 0/1 row-selection matrix: picks input row 2*i + ki - PAD for output row i;
            # out-of-range rows (the zero padding) simply have no entry.
            a_ki = jnp.where(s == ki - PAD, 1.0, 0.0)
            # Banded matrix carrying the 4 horizontal taps of kernel row ki
            # (stride-2 column gather + zero padding folded in; runs on the MXU).
            b_ki = jnp.zeros((W, Wo), dtype=jnp.float32)
            for kj in range(KW):
                b_ki = b_ki + jnp.where(d == kj - PAD, w_ref[ki, kj], 0.0)
            rows = jnp.dot(a_ki, x_ref[...], preferred_element_type=jnp.float32)
            acc = acc + jnp.dot(rows, b_ki, preferred_element_type=jnp.float32)

        # clamp_min(0.6) then clamp_max(0.8) == clip (MIN_ < MAX_)
        o_ref[...] = jnp.clip(acc, MIN_, MAX_)

    return kernel


@jax.jit
def conv_clamp(x, w, b):
    """x: (1, 1, H, W); w: (1, 1, KH, KW); b: (1,). Returns (1, 1, Ho, Wo)."""
    x = x.astype(jnp.float32)
    N, C, H, W = x.shape
    assert N == 1 and C == 1, "module is Conv2d(1, 1, ...)"
    # One fused kernel invocation; whole image lives in VMEM (a few hundred KB).
    # TODO(synk): add a row-tiled grid for images that do not fit comfortably in VMEM.
    assert H * W * 4 <= 8 * 1024 * 1024, "single-block kernel expects a small image"
    Ho = (H + 2 * PAD - KH) // STRIDE + 1
    Wo = (W + 2 * PAD - KW) // STRIDE + 1

    x2d = x.reshape(H, W)                        # metadata-only reshape, no HBM pass
    w2 = w.reshape(KH, KW).astype(jnp.float32)
    b1 = b.reshape(1).astype(jnp.float32)

    out = pl.pallas_call(
        _make_kernel(H, W, Ho, Wo),
        out_shape=jax.ShapeDtypeStruct((Ho, Wo), jnp.float32),
        in_specs=[
            pl.BlockSpec(memory_space=pltpu.MemorySpace.VMEM),   # raw image
            pl.BlockSpec(memory_space=pltpu.MemorySpace.SMEM),   # conv weights (scalars)
            pl.BlockSpec(memory_space=pltpu.MemorySpace.SMEM),   # conv bias (scalar)
        ],
        out_specs=pl.BlockSpec(memory_space=pltpu.MemorySpace.VMEM),
        compiler_params=pltpu.CompilerParams(
            vmem_limit_bytes=32 * 1024 * 1024,   # explicit, v7x-safe budget
        ),
    )(x2d, w2, b1)

    return out.reshape(1, 1, Ho, Wo)


if __name__ == "__main__":
    key = jax.random.PRNGKey(0)
    kx, kw, kb = jax.random.split(key, 3)

    # Deterministic Conv2d(1, 1, 4) parameters (PyTorch-like uniform init).
    bound = 1.0 / (KH * KW) ** 0.5
    w = jax.random.uniform(kw, (1, 1, KH, KW), jnp.float32, -bound, bound)
    b = jax.random.uniform(kb, (1,), jnp.float32, -bound, bound)

    # (200, 200) is the module's own x1; (64, 72) checks a second (rectangular) shape.
    for (H, W) in [(200, 200), (64, 72)]:
        x = jax.random.normal(jax.random.fold_in(kx, H * 1000 + W), (1, 1, H, W),
                              dtype=jnp.float32)
        out = jax.block_until_ready(conv_clamp(x, w, b))

        ref = lax.conv_general_dilated(
            x, w, window_strides=(STRIDE, STRIDE),
            padding=((PAD, PAD), (PAD, PAD)),
            dimension_numbers=("NCHW", "OIHW", "NCHW"),
            precision=lax.Precision.HIGHEST)
        ref = jnp.clip(ref + b.reshape(1, 1, 1, 1), MIN_, MAX_)

        assert out.shape == ref.shape, (out.shape, ref.shape)
        err = float(jnp.max(jnp.abs(out - ref)))
        assert err < 2e-3, err

    print("KERNEL_OK")
</pallas_src>

<mosaic_0001>
module attributes {stable_mosaic.version = 11 : i64} {
  func.func @kernel(%arg0: memref<200x200xf32, #tpu.memory_space<vmem>>, %arg1: memref<4x4xf32, #tpu.memory_space<smem>>, %arg2: memref<1xf32, #tpu.memory_space<smem>>, %arg3: memref<100x100xf32, #tpu.memory_space<vmem>>) attributes {dimension_semantics = [], scalar_prefetch = 0 : i64, scratch_operands = 0 : i64, tpu.core_type = #tpu.core_type<tc>} {
    %0 = tpu.iota {dimensions = array<i32: 0>} : vector<100x200xi32>
    %1 = tpu.iota {dimensions = array<i32: 1>} : vector<100x200xi32>
    %c2_i32 = arith.constant 2 : i32
    %2 = vector.broadcast %c2_i32 : i32 to vector<100x200xi32>
    %3 = arith.muli %2, %0 : vector<100x200xi32>
    %4 = arith.subi %1, %3 : vector<100x200xi32>
    %5 = tpu.iota {dimensions = array<i32: 0>} : vector<200x100xi32>
    %6 = tpu.iota {dimensions = array<i32: 1>} : vector<200x100xi32>
    %c2_i32_0 = arith.constant 2 : i32
    %7 = vector.broadcast %c2_i32_0 : i32 to vector<200x100xi32>
    %8 = arith.muli %7, %6 : vector<200x100xi32>
    %9 = arith.subi %5, %8 : vector<200x100xi32>
    %c0 = arith.constant 0 : index
    %10 = memref.load %arg2[%c0] : memref<1xf32, #tpu.memory_space<smem>>
    %11 = vector.broadcast %10 : f32 to vector<100x100xf32>
    %c-1_i32 = arith.constant -1 : i32
    %12 = vector.broadcast %c-1_i32 : i32 to vector<100x200xi32>
    %13 = arith.cmpi eq, %4, %12 : vector<100x200xi32>
    %cst = arith.constant 1.000000e+00 : f32
    %cst_1 = arith.constant 0.000000e+00 : f32
    %14 = vector.broadcast %cst : f32 to vector<100x200xf32>
    %15 = vector.broadcast %cst_1 : f32 to vector<100x200xf32>
    %16 = arith.select %13, %14, %15 : vector<100x200xi1>, vector<100x200xf32>
    %cst_2 = arith.constant 0.000000e+00 : f32
    %17 = vector.broadcast %cst_2 : f32 to vector<200x100xf32>
    %c-1_i32_3 = arith.constant -1 : i32
    %18 = vector.broadcast %c-1_i32_3 : i32 to vector<200x100xi32>
    %19 = arith.cmpi eq, %9, %18 : vector<200x100xi32>
    %c0_4 = arith.constant 0 : index
    %c0_5 = arith.constant 0 : index
    %20 = memref.load %arg1[%c0_4, %c0_5] : memref<4x4xf32, #tpu.memory_space<smem>>
    %cst_6 = arith.constant 0.000000e+00 : f32
    %21 = vector.broadcast %20 : f32 to vector<200x100xf32>
    %22 = vector.broadcast %cst_6 : f32 to vector<200x100xf32>
    %23 = arith.select %19, %21, %22 : vector<200x100xi1>, vector<200x100xf32>
    %24 = arith.addf %17, %23 : vector<200x100xf32>
    %c0_i32 = arith.constant 0 : i32
    %25 = vector.broadcast %c0_i32 : i32 to vector<200x100xi32>
    %26 = arith.cmpi eq, %9, %25 : vector<200x100xi32>
    %c0_7 = arith.constant 0 : index
    %c1 = arith.constant 1 : index
    %27 = memref.load %arg1[%c0_7, %c1] : memref<4x4xf32, #tpu.memory_space<smem>>
    %cst_8 = arith.constant 0.000000e+00 : f32
    %28 = vector.broadcast %27 : f32 to vector<200x100xf32>
    %29 = vector.broadcast %cst_8 : f32 to vector<200x100xf32>
    %30 = arith.select %26, %28, %29 : vector<200x100xi1>, vector<200x100xf32>
    %31 = arith.addf %24, %30 : vector<200x100xf32>
    %c1_i32 = arith.constant 1 : i32
    %32 = vector.broadcast %c1_i32 : i32 to vector<200x100xi32>
    %33 = arith.cmpi eq, %9, %32 : vector<200x100xi32>
    %c0_9 = arith.constant 0 : index
    %c2 = arith.constant 2 : index
    %34 = memref.load %arg1[%c0_9, %c2] : memref<4x4xf32, #tpu.memory_space<smem>>
    %cst_10 = arith.constant 0.000000e+00 : f32
    %35 = vector.broadcast %34 : f32 to vector<200x100xf32>
    %36 = vector.broadcast %cst_10 : f32 to vector<200x100xf32>
    %37 = arith.select %33, %35, %36 : vector<200x100xi1>, vector<200x100xf32>
    %38 = arith.addf %31, %37 : vector<200x100xf32>
    %c2_i32_11 = arith.constant 2 : i32
    %39 = vector.broadcast %c2_i32_11 : i32 to vector<200x100xi32>
    %40 = arith.cmpi eq, %9, %39 : vector<200x100xi32>
    %c0_12 = arith.constant 0 : index
    %c3 = arith.constant 3 : index
    %41 = memref.load %arg1[%c0_12, %c3] : memref<4x4xf32, #tpu.memory_space<smem>>
    %cst_13 = arith.constant 0.000000e+00 : f32
    %42 = vector.broadcast %41 : f32 to vector<200x100xf32>
    %43 = vector.broadcast %cst_13 : f32 to vector<200x100xf32>
    %44 = arith.select %40, %42, %43 : vector<200x100xi1>, vector<200x100xf32>
    %45 = arith.addf %38, %44 : vector<200x100xf32>
    %c0_14 = arith.constant 0 : index
    %c0_15 = arith.constant 0 : index
    %46 = vector.load %arg0[%c0_14, %c0_15] : memref<200x200xf32, #tpu.memory_space<vmem>>, vector<200x200xf32>
    %cst_16 = arith.constant dense<0.000000e+00> : vector<100x200xf32>
    %47 = tpu.matmul %16, %46, %cst_16 {dimension_numbers = #tpu.dot_dimension_numbers<[1], [0], [0], [1], [0, 0, 1, 1], [], []>} : vector<100x200xf32>, vector<200x200xf32>, vector<100x200xf32> -> vector<100x200xf32>
    %cst_17 = arith.constant dense<0.000000e+00> : vector<100x100xf32>
    %48 = tpu.matmul %47, %45, %cst_17 {dimension_numbers = #tpu.dot_dimension_numbers<[1], [0], [0], [1], [0, 0, 1, 1], [], []>} : vector<100x200xf32>, vector<200x100xf32>, vector<100x100xf32> -> vector<100x100xf32>
    %49 = arith.addf %11, %48 : vector<100x100xf32>
    %c0_i32_18 = arith.constant 0 : i32
    %50 = vector.broadcast %c0_i32_18 : i32 to vector<100x200xi32>
    %51 = arith.cmpi eq, %4, %50 : vector<100x200xi32>
    %cst_19 = arith.constant 1.000000e+00 : f32
    %cst_20 = arith.constant 0.000000e+00 : f32
    %52 = vector.broadcast %cst_19 : f32 to vector<100x200xf32>
    %53 = vector.broadcast %cst_20 : f32 to vector<100x200xf32>
    %54 = arith.select %51, %52, %53 : vector<100x200xi1>, vector<100x200xf32>
    %cst_21 = arith.constant 0.000000e+00 : f32
    %55 = vector.broadcast %cst_21 : f32 to vector<200x100xf32>
    %c-1_i32_22 = arith.constant -1 : i32
    %56 = vector.broadcast %c-1_i32_22 : i32 to vector<200x100xi32>
    %57 = arith.cmpi eq, %9, %56 : vector<200x100xi32>
    %c1_23 = arith.constant 1 : index
    %c0_24 = arith.constant 0 : index
    %58 = memref.load %arg1[%c1_23, %c0_24] : memref<4x4xf32, #tpu.memory_space<smem>>
    %cst_25 = arith.constant 0.000000e+00 : f32
    %59 = vector.broadcast %58 : f32 to vector<200x100xf32>
    %60 = vector.broadcast %cst_25 : f32 to vector<200x100xf32>
    %61 = arith.select %57, %59, %60 : vector<200x100xi1>, vector<200x100xf32>
    %62 = arith.addf %55, %61 : vector<200x100xf32>
    %c0_i32_26 = arith.constant 0 : i32
    %63 = vector.broadcast %c0_i32_26 : i32 to vector<200x100xi32>
    %64 = arith.cmpi eq, %9, %63 : vector<200x100xi32>
    %c1_27 = arith.constant 1 : index
    %c1_28 = arith.constant 1 : index
    %65 = memref.load %arg1[%c1_27, %c1_28] : memref<4x4xf32, #tpu.memory_space<smem>>
    %cst_29 = arith.constant 0.000000e+00 : f32
    %66 = vector.broadcast %65 : f32 to vector<200x100xf32>
    %67 = vector.broadcast %cst_29 : f32 to vector<200x100xf32>
    %68 = arith.select %64, %66, %67 : vector<200x100xi1>, vector<200x100xf32>
    %69 = arith.addf %62, %68 : vector<200x100xf32>
    %c1_i32_30 = arith.constant 1 : i32
    %70 = vector.broadcast %c1_i32_30 : i32 to vector<200x100xi32>
    %71 = arith.cmpi eq, %9, %70 : vector<200x100xi32>
    %c1_31 = arith.constant 1 : index
    %c2_32 = arith.constant 2 : index
    %72 = memref.load %arg1[%c1_31, %c2_32] : memref<4x4xf32, #tpu.memory_space<smem>>
    %cst_33 = arith.constant 0.000000e+00 : f32
    %73 = vector.broadcast %72 : f32 to vector<200x100xf32>
    %74 = vector.broadcast %cst_33 : f32 to vector<200x100xf32>
    %75 = arith.select %71, %73, %74 : vector<200x100xi1>, vector<200x100xf32>
    %76 = arith.addf %69, %75 : vector<200x100xf32>
    %c2_i32_34 = arith.constant 2 : i32
    %77 = vector.broadcast %c2_i32_34 : i32 to vector<200x100xi32>
    %78 = arith.cmpi eq, %9, %77 : vector<200x100xi32>
    %c1_35 = arith.constant 1 : index
    %c3_36 = arith.constant 3 : index
    %79 = memref.load %arg1[%c1_35, %c3_36] : memref<4x4xf32, #tpu.memory_space<smem>>
    %cst_37 = arith.constant 0.000000e+00 : f32
    %80 = vector.broadcast %79 : f32 to vector<200x100xf32>
    %81 = vector.broadcast %cst_37 : f32 to vector<200x100xf32>
    %82 = arith.select %78, %80, %81 : vector<200x100xi1>, vector<200x100xf32>
    %83 = arith.addf %76, %82 : vector<200x100xf32>
    %c0_38 = arith.constant 0 : index
    %c0_39 = arith.constant 0 : index
    %84 = vector.load %arg0[%c0_38, %c0_39] : memref<200x200xf32, #tpu.memory_space<vmem>>, vector<200x200xf32>
    %cst_40 = arith.constant dense<0.000000e+00> : vector<100x200xf32>
    %85 = tpu.matmul %54, %84, %cst_40 {dimension_numbers = #tpu.dot_dimension_numbers<[1], [0], [0], [1], [0, 0, 1, 1], [], []>} : vector<100x200xf32>, vector<200x200xf32>, vector<100x200xf32> -> vector<100x200xf32>
    %cst_41 = arith.constant dense<0.000000e+00> : vector<100x100xf32>
    %86 = tpu.matmul %85, %83, %cst_41 {dimension_numbers = #tpu.dot_dimension_numbers<[1], [0], [0], [1], [0, 0, 1, 1], [], []>} : vector<100x200xf32>, vector<200x100xf32>, vector<100x100xf32> -> vector<100x100xf32>
    %87 = arith.addf %49, %86 : vector<100x100xf32>
    %c1_i32_42 = arith.constant 1 : i32
    %88 = vector.broadcast %c1_i32_42 : i32 to vector<100x200xi32>
    %89 = arith.cmpi eq, %4, %88 : vector<100x200xi32>
    %cst_43 = arith.constant 1.000000e+00 : f32
    %cst_44 = arith.constant 0.000000e+00 : f32
    %90 = vector.broadcast %cst_43 : f32 to vector<100x200xf32>
    %91 = vector.broadcast %cst_44 : f32 to vector<100x200xf32>
    %92 = arith.select %89, %90, %91 : vector<100x200xi1>, vector<100x200xf32>
    %cst_45 = arith.constant 0.000000e+00 : f32
    %93 = vector.broadcast %cst_45 : f32 to vector<200x100xf32>
    %c-1_i32_46 = arith.constant -1 : i32
    %94 = vector.broadcast %c-1_i32_46 : i32 to vector<200x100xi32>
    %95 = arith.cmpi eq, %9, %94 : vector<200x100xi32>
    %c2_47 = arith.constant 2 : index
    %c0_48 = arith.constant 0 : index
    %96 = memref.load %arg1[%c2_47, %c0_48] : memref<4x4xf32, #tpu.memory_space<smem>>
    %cst_49 = arith.constant 0.000000e+00 : f32
    %97 = vector.broadcast %96 : f32 to vector<200x100xf32>
    %98 = vector.broadcast %cst_49 : f32 to vector<200x100xf32>
    %99 = arith.select %95, %97, %98 : vector<200x100xi1>, vector<200x100xf32>
    %100 = arith.addf %93, %99 : vector<200x100xf32>
    %c0_i32_50 = arith.constant 0 : i32
    %101 = vector.broadcast %c0_i32_50 : i32 to vector<200x100xi32>
    %102 = arith.cmpi eq, %9, %101 : vector<200x100xi32>
    %c2_51 = arith.constant 2 : index
    %c1_52 = arith.constant 1 : index
    %103 = memref.load %arg1[%c2_51, %c1_52] : memref<4x4xf32, #tpu.memory_space<smem>>
    %cst_53 = arith.constant 0.000000e+00 : f32
    %104 = vector.broadcast %103 : f32 to vector<200x100xf32>
    %105 = vector.broadcast %cst_53 : f32 to vector<200x100xf32>
    %106 = arith.select %102, %104, %105 : vector<200x100xi1>, vector<200x100xf32>
    %107 = arith.addf %100, %106 : vector<200x100xf32>
    %c1_i32_54 = arith.constant 1 : i32
    %108 = vector.broadcast %c1_i32_54 : i32 to vector<200x100xi32>
    %109 = arith.cmpi eq, %9, %108 : vector<200x100xi32>
    %c2_55 = arith.constant 2 : index
    %c2_56 = arith.constant 2 : index
    %110 = memref.load %arg1[%c2_55, %c2_56] : memref<4x4xf32, #tpu.memory_space<smem>>
    %cst_57 = arith.constant 0.000000e+00 : f32
    %111 = vector.broadcast %110 : f32 to vector<200x100xf32>
    %112 = vector.broadcast %cst_57 : f32 to vector<200x100xf32>
    %113 = arith.select %109, %111, %112 : vector<200x100xi1>, vector<200x100xf32>
    %114 = arith.addf %107, %113 : vector<200x100xf32>
    %c2_i32_58 = arith.constant 2 : i32
    %115 = vector.broadcast %c2_i32_58 : i32 to vector<200x100xi32>
    %116 = arith.cmpi eq, %9, %115 : vector<200x100xi32>
    %c2_59 = arith.constant 2 : index
    %c3_60 = arith.constant 3 : index
    %117 = memref.load %arg1[%c2_59, %c3_60] : memref<4x4xf32, #tpu.memory_space<smem>>
    %cst_61 = arith.constant 0.000000e+00 : f32
    %118 = vector.broadcast %117 : f32 to vector<200x100xf32>
    %119 = vector.broadcast %cst_61 : f32 to vector<200x100xf32>
    %120 = arith.select %116, %118, %119 : vector<200x100xi1>, vector<200x100xf32>
    %121 = arith.addf %114, %120 : vector<200x100xf32>
    %c0_62 = arith.constant 0 : index
    %c0_63 = arith.constant 0 : index
    %122 = vector.load %arg0[%c0_62, %c0_63] : memref<200x200xf32, #tpu.memory_space<vmem>>, vector<200x200xf32>
    %cst_64 = arith.constant dense<0.000000e+00> : vector<100x200xf32>
    %123 = tpu.matmul %92, %122, %cst_64 {dimension_numbers = #tpu.dot_dimension_numbers<[1], [0], [0], [1], [0, 0, 1, 1], [], []>} : vector<100x200xf32>, vector<200x200xf32>, vector<100x200xf32> -> vector<100x200xf32>
    %cst_65 = arith.constant dense<0.000000e+00> : vector<100x100xf32>
    %124 = tpu.matmul %123, %121, %cst_65 {dimension_numbers = #tpu.dot_dimension_numbers<[1], [0], [0], [1], [0, 0, 1, 1], [], []>} : vector<100x200xf32>, vector<200x100xf32>, vector<100x100xf32> -> vector<100x100xf32>
    %125 = arith.addf %87, %124 : vector<100x100xf32>
    %c2_i32_66 = arith.constant 2 : i32
    %126 = vector.broadcast %c2_i32_66 : i32 to vector<100x200xi32>
    %127 = arith.cmpi eq, %4, %126 : vector<100x200xi32>
    %cst_67 = arith.constant 1.000000e+00 : f32
    %cst_68 = arith.constant 0.000000e+00 : f32
    %128 = vector.broadcast %cst_67 : f32 to vector<100x200xf32>
    %129 = vector.broadcast %cst_68 : f32 to vector<100x200xf32>
    %130 = arith.select %127, %128, %129 : vector<100x200xi1>, vector<100x200xf32>
    %cst_69 = arith.constant 0.000000e+00 : f32
    %131 = vector.broadcast %cst_69 : f32 to vector<200x100xf32>
    %c-1_i32_70 = arith.constant -1 : i32
    %132 = vector.broadcast %c-1_i32_70 : i32 to vector<200x100xi32>
    %133 = arith.cmpi eq, %9, %132 : vector<200x100xi32>
    %c3_71 = arith.constant 3 : index
    %c0_72 = arith.constant 0 : index
    %134 = memref.load %arg1[%c3_71, %c0_72] : memref<4x4xf32, #tpu.memory_space<smem>>
    %cst_73 = arith.constant 0.000000e+00 : f32
    %135 = vector.broadcast %134 : f32 to vector<200x100xf32>
    %136 = vector.broadcast %cst_73 : f32 to vector<200x100xf32>
    %137 = arith.select %133, %135, %136 : vector<200x100xi1>, vector<200x100xf32>
    %138 = arith.addf %131, %137 : vector<200x100xf32>
    %c0_i32_74 = arith.constant 0 : i32
    %139 = vector.broadcast %c0_i32_74 : i32 to vector<200x100xi32>
    %140 = arith.cmpi eq, %9, %139 : vector<200x100xi32>
    %c3_75 = arith.constant 3 : index
    %c1_76 = arith.constant 1 : index
    %141 = memref.load %arg1[%c3_75, %c1_76] : memref<4x4xf32, #tpu.memory_space<smem>>
    %cst_77 = arith.constant 0.000000e+00 : f32
    %142 = vector.broadcast %141 : f32 to vector<200x100xf32>
    %143 = vector.broadcast %cst_77 : f32 to vector<200x100xf32>
    %144 = arith.select %140, %142, %143 : vector<200x100xi1>, vector<200x100xf32>
    %145 = arith.addf %138, %144 : vector<200x100xf32>
    %c1_i32_78 = arith.constant 1 : i32
    %146 = vector.broadcast %c1_i32_78 : i32 to vector<200x100xi32>
    %147 = arith.cmpi eq, %9, %146 : vector<200x100xi32>
    %c3_79 = arith.constant 3 : index
    %c2_80 = arith.constant 2 : index
    %148 = memref.load %arg1[%c3_79, %c2_80] : memref<4x4xf32, #tpu.memory_space<smem>>
    %cst_81 = arith.constant 0.000000e+00 : f32
    %149 = vector.broadcast %148 : f32 to vector<200x100xf32>
    %150 = vector.broadcast %cst_81 : f32 to vector<200x100xf32>
    %151 = arith.select %147, %149, %150 : vector<200x100xi1>, vector<200x100xf32>
    %152 = arith.addf %145, %151 : vector<200x100xf32>
    %c2_i32_82 = arith.constant 2 : i32
    %153 = vector.broadcast %c2_i32_82 : i32 to vector<200x100xi32>
    %154 = arith.cmpi eq, %9, %153 : vector<200x100xi32>
    %c3_83 = arith.constant 3 : index
    %c3_84 = arith.constant 3 : index
    %155 = memref.load %arg1[%c3_83, %c3_84] : memref<4x4xf32, #tpu.memory_space<smem>>
    %cst_85 = arith.constant 0.000000e+00 : f32
    %156 = vector.broadcast %155 : f32 to vector<200x100xf32>
    %157 = vector.broadcast %cst_85 : f32 to vector<200x100xf32>
    %158 = arith.select %154, %156, %157 : vector<200x100xi1>, vector<200x100xf32>
    %159 = arith.addf %152, %158 : vector<200x100xf32>
    %c0_86 = arith.constant 0 : index
    %c0_87 = arith.constant 0 : index
    %160 = vector.load %arg0[%c0_86, %c0_87] : memref<200x200xf32, #tpu.memory_space<vmem>>, vector<200x200xf32>
    %cst_88 = arith.constant dense<0.000000e+00> : vector<100x200xf32>
    %161 = tpu.matmul %130, %160, %cst_88 {dimension_numbers = #tpu.dot_dimension_numbers<[1], [0], [0], [1], [0, 0, 1, 1], [], []>} : vector<100x200xf32>, vector<200x200xf32>, vector<100x200xf32> -> vector<100x200xf32>
    %cst_89 = arith.constant dense<0.000000e+00> : vector<100x100xf32>
    %162 = tpu.matmul %161, %159, %cst_89 {dimension_numbers = #tpu.dot_dimension_numbers<[1], [0], [0], [1], [0, 0, 1, 1], [], []>} : vector<100x200xf32>, vector<200x100xf32>, vector<100x100xf32> -> vector<100x100xf32>
    %163 = arith.addf %125, %162 : vector<100x100xf32>
    %cst_90 = arith.constant 6.000000e-01 : f32
    %cst_91 = arith.constant 8.000000e-01 : f32
    %164 = vector.broadcast %cst_90 : f32 to vector<100x100xf32>
    %165 = arith.maximumf %164, %163 : vector<100x100xf32>
    %166 = vector.broadcast %cst_91 : f32 to vector<100x100xf32>
    %167 = arith.minimumf %166, %165 : vector<100x100xf32>
    %c0_92 = arith.constant 0 : index
    %c0_93 = arith.constant 0 : index
    %168 = vector.load %arg3[%c0_92, %c0_93] : memref<100x100xf32, #tpu.memory_space<vmem>>, vector<100x100xf32>
    tpu.vector_store %arg3[%c0_92, %c0_93], %167 {strides = array<i32>} : memref<100x100xf32, #tpu.memory_space<vmem>>, vector<100x100xf32>,
    return
  }
}

</mosaic_0001>

<llo_original>
// kernel: conv_clamp.1
$region0: #{conv_clamp.1}
  #allocation0 [shape = 'u32[]', space=smem, size = 0x4, offset = 0x4, fixed_abs, tag = 'smem constant byte address 0x4 - core index']
  #allocation1 [shape = 'u32[144,128]{1,0:T(1,128)}', space=vmem, size = 0x12000, scoped, tag = 'internal scratch']
  #allocation2 [shape = 'f32[1]{0:T(128)S(6)}', space=smem, size = 0x200, scoped, tag = 'scoped memory for conv_clamp.1']
  %s0 = inlined_call_operand.hbm [shape: f32[200,200], index: 0, kind: input, shape index: {}]
  %s1 = inlined_call_operand.vmem [shape: f32[4,4], index: 1, kind: input, shape index: {}]
  %s2 = inlined_call_operand.<no memory space> [shape: f32[1], index: 2, kind: input, shape index: {}]
  %s3 = inlined_call_operand.vmem [shape: f32[100,100], index: 3, kind: output, shape index: {}]
  %s4 = sld [smem:[#allocation0]]
  $region30: #{conv_clamp.1} parent=0
    _
  %s6 = ssub.s32 1, %s4
  %s7 = scalar_select 0, %s6, %s4
  %8 = sst [smem:[#allocation2]] %s2
  $region1: #{conv_clamp.1} parent=0
    #allocation3 [shape = 'u8[204800]{0}', space=vmem, size = 0x32000, scoped, tag = 'input window, operand 0, single buffered']
    #allocation4 [shape = 's32[1]{0}', space=sflag, size = 0x4, scoped, tag = 'scoped memory for conv_clamp.1']
    #allocation5 [shape = 's32[1]{0}', space=sflag, size = 0x4, scoped, tag = 'scoped memory for conv_clamp.1']
    #allocation6 [shape = 'u8[2048]{0}', space=smem, size = 0x800, scoped, tag = 'input window, operand 1, single buffered']
    %9 = vsyncpa [#allocation4], 0
    %10 = vsyncpa [#allocation5], 0
    // Predicated region
    $region2: #{conv_clamp.1} parent=1 // pred_check
      _
    $region3: #{conv_clamp.1} parent=1 // pred_check_branch
      %12 = sbr.rel (0) target = $region5
    $region4: #{conv_clamp.1} parent=1 // pred_region
      %s14 = ssub.s32 6400, 6400
      %15 = vsyncadd [#allocation4], %s14
      %s16 = sshll.u32 [#allocation3], 4
      %s17 = int_to_ptr.vmem [resolvable:$true] %s16
      %22 = dma.hbm_to_vmem [thread:$0]  %s0, 6400, %s17, [#allocation4], 256, 256, 16
    $region5: #{conv_clamp.1} parent=1 // pred_fallthru
      _
    // Predicated region
    $region6: #{conv_clamp.1} parent=1 // pred_check
      _
    $region7: #{conv_clamp.1} parent=1 // pred_check_branch
      %24 = sbr.rel (0) target = $region9
    $region8: #{conv_clamp.1} parent=1 // pred_region
      %s26 = ssub.s32 64, 64
      %27 = vsyncadd [#allocation5], %s26
      %s29 = sshll.u32 %s1, 4
      %s30 = int_to_ptr.vmem [resolvable:$true] %s29
      %32 = dma.vmem_to_smem %s30, 64, [#allocation6], [#allocation5]
    $region9: #{conv_clamp.1} parent=1 // pred_fallthru
      _
    // Predicated region
    $region10: #{conv_clamp.1} parent=1 // pred_check
      _
    $region11: #{conv_clamp.1} parent=1 // pred_check_branch
      %34 = sbr.rel (0) target = $region13
    $region12: #{conv_clamp.1} parent=1 // pred_region
      _
    $region13: #{conv_clamp.1} parent=1 // pred_fallthru
      _
    // Predicated region
    $region14: #{conv_clamp.1} parent=1 // pred_check
      _
    $region15: #{conv_clamp.1} parent=1 // pred_check_branch
      %36 = sbr.rel (0) target = $region17
    $region16: #{conv_clamp.1} parent=1 // pred_region
      %37 = dma.done [#allocation4], 6400
    $region17: #{conv_clamp.1} parent=1 // pred_fallthru
      _
    // Predicated region
    $region18: #{conv_clamp.1} parent=1 // pred_check
      _
    $region19: #{conv_clamp.1} parent=1 // pred_check_branch
      %39 = sbr.rel (0) target = $region21
    $region20: #{conv_clamp.1} parent=1 // pred_region
      %40 = dma.done [#allocation5], 64
    $region21: #{conv_clamp.1} parent=1 // pred_fallthru
      _
    %41 = sfence
    %v42 = vlaneseq
    %v43 = vshrl.u32 %v42, 7
    %v44 = vadd.s32 %v43, 8
    %v45 = vadd.s32 %v43, 16
    %v46 = vadd.s32 %v43, 24
    %v47 = vadd.s32 %v43, 32
    %v48 = vadd.s32 %v43, 40
    %v49 = vadd.s32 %v43, 48
    %v50 = vadd.s32 %v43, 56
    %v51 = vadd.s32 %v43, 64
    %v52 = vadd.s32 %v43, 72
    %v53 = vadd.s32 %v43, 80
    %v54 = vadd.s32 %v43, 88
    %v55 = vadd.s32 %v43, 96
    %v56 = vlaneseq
    %v57 = vand.u32 %v56, 127
    %v58 = vadd.s32 %v57, 128
    %v59 = vmul.u32 %v43, 2
    %v60 = vmul.u32 %v44, 2
    %v61 = vmul.u32 %v45, 2
    %v62 = vmul.u32 %v46, 2
    %v63 = vmul.u32 %v47, 2
    %v64 = vmul.u32 %v48, 2
    %v65 = vmul.u32 %v49, 2
    %v66 = vmul.u32 %v50, 2
    %v67 = vmul.u32 %v51, 2
    %v68 = vmul.u32 %v52, 2
    %v69 = vmul.u32 %v53, 2
    %v70 = vmul.u32 %v54, 2
    %v71 = vmul.u32 %v55, 2
    %v72 = vsub.s32 %v57, %v59
    %v73 = vsub.s32 %v58, %v59
    %v74 = vsub.s32 %v57, %v60
    %v75 = vsub.s32 %v58, %v60
    %v76 = vsub.s32 %v57, %v61
    %v77 = vsub.s32 %v58, %v61
    %v78 = vsub.s32 %v57, %v62
    %v79 = vsub.s32 %v58, %v62
    %v80 = vsub.s32 %v57, %v63
    %v81 = vsub.s32 %v58, %v63
    %v82 = vsub.s32 %v57, %v64
    %v83 = vsub.s32 %v58, %v64
    %v84 = vsub.s32 %v57, %v65
    %v85 = vsub.s32 %v58, %v65
    %v86 = vsub.s32 %v57, %v66
    %v87 = vsub.s32 %v58, %v66
    %v88 = vsub.s32 %v57, %v67
    %v89 = vsub.s32 %v58, %v67
    %v90 = vsub.s32 %v57, %v68
    %v91 = vsub.s32 %v58, %v68
    %v92 = vsub.s32 %v57, %v69
    %v93 = vsub.s32 %v58, %v69
    %v94 = vsub.s32 %v57, %v70
    %v95 = vsub.s32 %v58, %v70
    %v96 = vsub.s32 %v57, %v71
    %v97 = vsub.s32 %v58, %v71
    %v98 = vadd.s32 %v43, 104
    %v99 = vadd.s32 %v43, 112
    %v100 = vadd.s32 %v43, 120
    %v101 = vadd.s32 %v43, 128
    %v102 = vadd.s32 %v43, 136
    %v103 = vadd.s32 %v43, 144
    %v104 = vadd.s32 %v43, 152
    %v105 = vadd.s32 %v43, 160
    %v106 = vadd.s32 %v43, 168
    %v107 = vadd.s32 %v43, 176
    %v108 = vadd.s32 %v43, 184
    %v109 = vadd.s32 %v43, 192
    %v110 = vmul.u32 %v57, 2
    %v111 = vsub.s32 %v43, %v110
    %v112 = vsub.s32 %v44, %v110
    %v113 = vsub.s32 %v45, %v110
    %v114 = vsub.s32 %v46, %v110
    %v115 = vsub.s32 %v47, %v110
    %v116 = vsub.s32 %v48, %v110
    %v117 = vsub.s32 %v49, %v110
    %v118 = vsub.s32 %v50, %v110
    %v119 = vsub.s32 %v51, %v110
    %v120 = vsub.s32 %v52, %v110
    %v121 = vsub.s32 %v53, %v110
    %v122 = vsub.s32 %v54, %v110
    %v123 = vsub.s32 %v55, %v110
    %v124 = vsub.s32 %v98, %v110
    %v125 = vsub.s32 %v99, %v110
    %v126 = vsub.s32 %v100, %v110
    %v127 = vsub.s32 %v101, %v110
    %v128 = vsub.s32 %v102, %v110
    %v129 = vsub.s32 %v103, %v110
    %v130 = vsub.s32 %v104, %v110
    %v131 = vsub.s32 %v105, %v110
    %v132 = vsub.s32 %v106, %v110
    %v133 = vsub.s32 %v107, %v110
    %v134 = vsub.s32 %v108, %v110
    %v135 = vsub.s32 %v109, %v110
    %s136 = sld [smem:[#allocation2]]
    %v137 = vstv %s136
    %vm138 = vcmp.eq.s32.totalorder %v72, 4294967295
    %vm139 = vcmp.eq.s32.totalorder %v73, 4294967295
    %vm140 = vcmp.eq.s32.totalorder %v74, 4294967295
    %vm141 = vcmp.eq.s32.totalorder %v75, 4294967295
    %vm142 = vcmp.eq.s32.totalorder %v76, 4294967295
    %vm143 = vcmp.eq.s32.totalorder %v77, 4294967295
    %vm144 = vcmp.eq.s32.totalorder %v78, 4294967295
    %vm145 = vcmp.eq.s32.totalorder %v79, 4294967295
    %vm146 = vcmp.eq.s32.totalorder %v80, 4294967295
    %vm147 = vcmp.eq.s32.totalorder %v81, 4294967295
    %vm148 = vcmp.eq.s32.totalorder %v82, 4294967295
    %vm149 = vcmp.eq.s32.totalorder %v83, 4294967295
    %vm150 = vcmp.eq.s32.totalorder %v84, 4294967295
    %vm151 = vcmp.eq.s32.totalorder %v85, 4294967295
    %vm152 = vcmp.eq.s32.totalorder %v86, 4294967295
    %vm153 = vcmp.eq.s32.totalorder %v87, 4294967295
    %vm154 = vcmp.eq.s32.totalorder %v88, 4294967295
    %vm155 = vcmp.eq.s32.totalorder %v89, 4294967295
    %vm156 = vcmp.eq.s32.totalorder %v90, 4294967295
    %vm157 = vcmp.eq.s32.totalorder %v91, 4294967295
    %vm158 = vcmp.eq.s32.totalorder %v92, 4294967295
    %vm159 = vcmp.eq.s32.totalorder %v93, 4294967295
    %vm160 = vcmp.eq.s32.totalorder %v94, 4294967295
    %vm161 = vcmp.eq.s32.totalorder %v95, 4294967295
    %vm162 = vcmp.eq.s32.totalorder %v96, 4294967295
    %vm163 = vcmp.eq.s32.totalorder %v97, 4294967295
    %v164 = vsel %vm138, 1.0, 0.0
    %v165 = vsel %vm139, 1.0, 0.0
    %v166 = vsel %vm140, 1.0, 0.0
    %v167 = vsel %vm141, 1.0, 0.0
    %v168 = vsel %vm142, 1.0, 0.0
    %v169 = vsel %vm143, 1.0, 0.0
    %v170 = vsel %vm144, 1.0, 0.0
    %v171 = vsel %vm145, 1.0, 0.0
    %v172 = vsel %vm146, 1.0, 0.0
    %v173 = vsel %vm147, 1.0, 0.0
    %v174 = vsel %vm148, 1.0, 0.0
    %v175 = vsel %vm149, 1.0, 0.0
    %v176 = vsel %vm150, 1.0, 0.0
    %v177 = vsel %vm151, 1.0, 0.0
    %v178 = vsel %vm152, 1.0, 0.0
    %v179 = vsel %vm153, 1.0, 0.0
    %v180 = vsel %vm154, 1.0, 0.0
    %v181 = vsel %vm155, 1.0, 0.0
    %v182 = vsel %vm156, 1.0, 0.0
    %v183 = vsel %vm157, 1.0, 0.0
    %v184 = vsel %vm158, 1.0, 0.0
    %v185 = vsel %vm159, 1.0, 0.0
    %v186 = vsel %vm160, 1.0, 0.0
    %v187 = vsel %vm161, 1.0, 0.0
    %v188 = vsel %vm162, 1.0, 0.0
    %v189 = vsel %vm163, 1.0, 0.0
    %vm190 = vcmp.eq.s32.totalorder %v111, 4294967295
    %vm191 = vcmp.eq.s32.totalorder %v112, 4294967295
    %vm192 = vcmp.eq.s32.totalorder %v113, 4294967295
    %vm193 = vcmp.eq.s32.totalorder %v114, 4294967295
    %vm194 = vcmp.eq.s32.totalorder %v115, 4294967295
    %vm195 = vcmp.eq.s32.totalorder %v116, 4294967295
    %vm196 = vcmp.eq.s32.totalorder %v117, 4294967295
    %vm197 = vcmp.eq.s32.totalorder %v118, 4294967295
    %vm198 = vcmp.eq.s32.totalorder %v119, 4294967295
    %vm199 = vcmp.eq.s32.totalorder %v120, 4294967295
    %vm200 = vcmp.eq.s32.totalorder %v121, 4294967295
    %vm201 = vcmp.eq.s32.totalorder %v122, 4294967295
    %vm202 = vcmp.eq.s32.totalorder %v123, 4294967295
    %vm203 = vcmp.eq.s32.totalorder %v124, 4294967295
    %vm204 = vcmp.eq.s32.totalorder %v125, 4294967295
    %vm205 = vcmp.eq.s32.totalorder %v126, 4294967295
    %vm206 = vcmp.eq.s32.totalorder %v127, 4294967295
    %vm207 = vcmp.eq.s32.totalorder %v128, 4294967295
    %vm208 = vcmp.eq.s32.totalorder %v129, 4294967295
    %vm209 = vcmp.eq.s32.totalorder %v130, 4294967295
    %vm210 = vcmp.eq.s32.totalorder %v131, 4294967295
    %vm211 = vcmp.eq.s32.totalorder %v132, 4294967295
    %vm212 = vcmp.eq.s32.totalorder %v133, 4294967295
    %vm213 = vcmp.eq.s32.totalorder %v134, 4294967295
    %vm214 = vcmp.eq.s32.totalorder %v135, 4294967295
    %s215 = sld [smem:[#allocation6]]
    %v216 = vstv %s215
    %v217 = vsel %vm190, %v216, 0.0
    %v218 = vsel %vm191, %v216, 0.0
    %v219 = vsel %vm192, %v216, 0.0
    %v220 = vsel %vm193, %v216, 0.0
    %v221 = vsel %vm194, %v216, 0.0
    %v222 = vsel %vm195, %v216, 0.0
    %v223 = vsel %vm196, %v216, 0.0
    %v224 = vsel %vm197, %v216, 0.0
    %v225 = vsel %vm198, %v216, 0.0
    %v226 = vsel %vm199, %v216, 0.0
    %v227 = vsel %vm200, %v216, 0.0
    %v228 = vsel %vm201, %v216, 0.0
    %v229 = vsel %vm202, %v216, 0.0
    %v230 = vsel %vm203, %v216, 0.0
    %v231 = vsel %vm204, %v216, 0.0
    %v232 = vsel %vm205, %v216, 0.0
    %v233 = vsel %vm206, %v216, 0.0
    %v234 = vsel %vm207, %v216, 0.0
    %v235 = vsel %vm208, %v216, 0.0
    %v236 = vsel %vm209, %v216, 0.0
    %v237 = vsel %vm210, %v216, 0.0
    %v238 = vsel %vm211, %v216, 0.0
    %v239 = vsel %vm212, %v216, 0.0
    %v240 = vsel %vm213, %v216, 0.0
    %v241 = vsel %vm214, %v216, 0.0
    %v242 = vadd.f32 %v217, 0.0
    %v243 = vadd.f32 %v218, 0.0
    %v244 = vadd.f32 %v219, 0.0
    %v245 = vadd.f32 %v220, 0.0
    %v246 = vadd.f32 %v221, 0.0
    %v247 = vadd.f32 %v222, 0.0
    %v248 = vadd.f32 %v223, 0.0
    %v249 = vadd.f32 %v224, 0.0
    %v250 = vadd.f32 %v225, 0.0
    %v251 = vadd.f32 %v226, 0.0
    %v252 = vadd.f32 %v227, 0.0
    %v253 = vadd.f32 %v228, 0.0
    %v254 = vadd.f32 %v229, 0.0
    %v255 = vadd.f32 %v230, 0.0
    %v256 = vadd.f32 %v231, 0.0
    %v257 = vadd.f32 %v232, 0.0
    %v258 = vadd.f32 %v233, 0.0
    %v259 = vadd.f32 %v234, 0.0
    %v260 = vadd.f32 %v235, 0.0
    %v261 = vadd.f32 %v236, 0.0
    %v262 = vadd.f32 %v237, 0.0
    %v263 = vadd.f32 %v238, 0.0
    %v264 = vadd.f32 %v239, 0.0
    %v265 = vadd.f32 %v240, 0.0
    %v266 = vadd.f32 %v241, 0.0
    %vm267 = vcmp.eq.s32.totalorder %v111, 0
    %vm268 = vcmp.eq.s32.totalorder %v112, 0
    %vm269 = vcmp.eq.s32.totalorder %v113, 0
    %vm270 = vcmp.eq.s32.totalorder %v114, 0
    %vm271 = vcmp.eq.s32.totalorder %v115, 0
    %vm272 = vcmp.eq.s32.totalorder %v116, 0
    %vm273 = vcmp.eq.s32.totalorder %v117, 0
    %vm274 = vcmp.eq.s32.totalorder %v118, 0
    %vm275 = vcmp.eq.s32.totalorder %v119, 0
    %vm276 = vcmp.eq.s32.totalorder %v120, 0
    %vm277 = vcmp.eq.s32.totalorder %v121, 0
    %vm278 = vcmp.eq.s32.totalorder %v122, 0
    %vm279 = vcmp.eq.s32.totalorder %v123, 0
    %vm280 = vcmp.eq.s32.totalorder %v124, 0
    %vm281 = vcmp.eq.s32.totalorder %v125, 0
    %vm282 = vcmp.eq.s32.totalorder %v126, 0
    %vm283 = vcmp.eq.s32.totalorder %v127, 0
    %vm284 = vcmp.eq.s32.totalorder %v128, 0
    %vm285 = vcmp.eq.s32.totalorder %v129, 0
    %vm286 = vcmp.eq.s32.totalorder %v130, 0
    %vm287 = vcmp.eq.s32.totalorder %v131, 0
    %vm288 = vcmp.eq.s32.totalorder %v132, 0
    %vm289 = vcmp.eq.s32.totalorder %v133, 0
    %vm290 = vcmp.eq.s32.totalorder %v134, 0
    %vm291 = vcmp.eq.s32.totalorder %v135, 0
    %s292 = sld [smem:[#allocation6 + $0x1]]
    %v293 = vstv %s292
    %v294 = vsel %vm267, %v293, 0.0
    %v295 = vsel %vm268, %v293, 0.0
    %v296 = vsel %vm269, %v293, 0.0
    %v297 = vsel %vm270, %v293, 0.0
    %v298 = vsel %vm271, %v293, 0.0
    %v299 = vsel %vm272, %v293, 0.0
    %v300 = vsel %vm273, %v293, 0.0
    %v301 = vsel %vm274, %v293, 0.0
    %v302 = vsel %vm275, %v293, 0.0
    %v303 = vsel %vm276, %v293, 0.0
    %v304 = vsel %vm277, %v293, 0.0
    %v305 = vsel %vm278, %v293, 0.0
    %v306 = vsel %vm279, %v293, 0.0
    %v307 = vsel %vm280, %v293, 0.0
    %v308 = vsel %vm281, %v293, 0.0
    %v309 = vsel %vm282, %v293, 0.0
    %v310 = vsel %vm283, %v293, 0.0
    %v311 = vsel %vm284, %v293, 0.0
    %v312 = vsel %vm285, %v293, 0.0
    %v313 = vsel %vm286, %v293, 0.0
    %v314 = vsel %vm287, %v293, 0.0
    %v315 = vsel %vm288, %v293, 0.0
    %v316 = vsel %vm289, %v293, 0.0
    %v317 = vsel %vm290, %v293, 0.0
    %v318 = vsel %vm291, %v293, 0.0
    %v319 = vadd.f32 %v242, %v294
    %v320 = vadd.f32 %v243, %v295
    %v321 = vadd.f32 %v244, %v296
    %v322 = vadd.f32 %v245, %v297
    %v323 = vadd.f32 %v246, %v298
    %v324 = vadd.f32 %v247, %v299
    %v325 = vadd.f32 %v248, %v300
    %v326 = vadd.f32 %v249, %v301
    %v327 = vadd.f32 %v250, %v302
    %v328 = vadd.f32 %v251, %v303
    %v329 = vadd.f32 %v252, %v304
    %v330 = vadd.f32 %v253, %v305
    %v331 = vadd.f32 %v254, %v306
    %v332 = vadd.f32 %v255, %v307
    %v333 = vadd.f32 %v256, %v308
    %v334 = vadd.f32 %v257, %v309
    %v335 = vadd.f32 %v258, %v310
    %v336 = vadd.f32 %v259, %v311
    %v337 = vadd.f32 %v260, %v312
    %v338 = vadd.f32 %v261, %v313
    %v339 = vadd.f32 %v262, %v314
    %v340 = vadd.f32 %v263, %v315
    %v341 = vadd.f32 %v264, %v316
    %v342 = vadd.f32 %v265, %v317
    %v343 = vadd.f32 %v266, %v318
    %vm344 = vcmp.eq.s32.totalorder %v111, 1
    %vm345 = vcmp.eq.s32.totalorder %v112, 1
    %vm346 = vcmp.eq.s32.totalorder %v113, 1
    %vm347 = vcmp.eq.s32.totalorder %v114, 1
    %vm348 = vcmp.eq.s32.totalorder %v115, 1
    %vm349 = vcmp.eq.s32.totalorder %v116, 1
    %vm350 = vcmp.eq.s32.totalorder %v117, 1
    %vm351 = vcmp.eq.s32.totalorder %v118, 1
    %vm352 = vcmp.eq.s32.totalorder %v119, 1
    %vm353 = vcmp.eq.s32.totalorder %v120, 1
    %vm354 = vcmp.eq.s32.totalorder %v121, 1
    %vm355 = vcmp.eq.s32.totalorder %v122, 1
    %vm356 = vcmp.eq.s32.totalorder %v123, 1
    %vm357 = vcmp.eq.s32.totalorder %v124, 1
    %vm358 = vcmp.eq.s32.totalorder %v125, 1
    %vm359 = vcmp.eq.s32.totalorder %v126, 1
    %vm360 = vcmp.eq.s32.totalorder %v127, 1
    %vm361 = vcmp.eq.s32.totalorder %v128, 1
    %vm362 = vcmp.eq.s32.totalorder %v129, 1
    %vm363 = vcmp.eq.s32.totalorder %v130, 1
    %vm364 = vcmp.eq.s32.totalorder %v131, 1
    %vm365 = vcmp.eq.s32.totalorder %v132, 1
    %vm366 = vcmp.eq.s32.totalorder %v133, 1
    %vm367 = vcmp.eq.s32.totalorder %v134, 1
    %vm368 = vcmp.eq.s32.totalorder %v135, 1
    %s369 = sld [smem:[#allocation6 + $0x2]]
    %v370 = vstv %s369
    %v371 = vsel %vm344, %v370, 0.0
    %v372 = vsel %vm345, %v370, 0.0
    %v373 = vsel %vm346, %v370, 0.0
    %v374 = vsel %vm347, %v370, 0.0
    %v375 = vsel %vm348, %v370, 0.0
    %v376 = vsel %vm349, %v370, 0.0
    %v377 = vsel %vm350, %v370, 0.0
    %v378 = vsel %vm351, %v370, 0.0
    %v379 = vsel %vm352, %v370, 0.0
    %v380 = vsel %vm353, %v370, 0.0
    %v381 = vsel %vm354, %v370, 0.0
    %v382 = vsel %vm355, %v370, 0.0
    %v383 = vsel %vm356, %v370, 0.0
    %v384 = vsel %vm357, %v370, 0.0
    %v385 = vsel %vm358, %v370, 0.0
    %v386 = vsel %vm359, %v370, 0.0
    %v387 = vsel %vm360, %v370, 0.0
    %v388 = vsel %vm361, %v370, 0.0
    %v389 = vsel %vm362, %v370, 0.0
    %v390 = vsel %vm363, %v370, 0.0
    %v391 = vsel %vm364, %v370, 0.0
    %v392 = vsel %vm365, %v370, 0.0
    %v393 = vsel %vm366, %v370, 0.0
    %v394 = vsel %vm367, %v370, 0.0
    %v395 = vsel %vm368, %v370, 0.0
    %v396 = vadd.f32 %v319, %v371
    %v397 = vadd.f32 %v320, %v372
    %v398 = vadd.f32 %v321, %v373
    %v399 = vadd.f32 %v322, %v374
    %v400 = vadd.f32 %v323, %v375
    %v401 = vadd.f32 %v324, %v376
    %v402 = vadd.f32 %v325, %v377
    %v403 = vadd.f32 %v326, %v378
    %v404 = vadd.f32 %v327, %v379
    %v405 = vadd.f32 %v328, %v380
    %v406 = vadd.f32 %v329, %v381
    %v407 = vadd.f32 %v330, %v382
    %v408 = vadd.f32 %v331, %v383
    %v409 = vadd.f32 %v332, %v384
    %v410 = vadd.f32 %v333, %v385
    %v411 = vadd.f32 %v334, %v386
    %v412 = vadd.f32 %v335, %v387
    %v413 = vadd.f32 %v336, %v388
    %v414 = vadd.f32 %v337, %v389
    %v415 = vadd.f32 %v338, %v390
    %v416 = vadd.f32 %v339, %v391
    %v417 = vadd.f32 %v340, %v392
    %v418 = vadd.f32 %v341, %v393
    %v419 = vadd.f32 %v342, %v394
    %v420 = vadd.f32 %v343, %v395
    %vm421 = vcmp.eq.s32.totalorder %v111, 2
    %vm422 = vcmp.eq.s32.totalorder %v112, 2
    %vm423 = vcmp.eq.s32.totalorder %v113, 2
    %vm424 = vcmp.eq.s32.totalorder %v114, 2
    %vm425 = vcmp.eq.s32.totalorder %v115, 2
    %vm426 = vcmp.eq.s32.totalorder %v116, 2
    %vm427 = vcmp.eq.s32.totalorder %v117, 2
    %vm428 = vcmp.eq.s32.totalorder %v118, 2
    %vm429 = vcmp.eq.s32.totalorder %v119, 2
    %vm430 = vcmp.eq.s32.totalorder %v120, 2
    %vm431 = vcmp.eq.s32.totalorder %v121, 2
    %vm432 = vcmp.eq.s32.totalorder %v122, 2
    %vm433 = vcmp.eq.s32.totalorder %v123, 2
    %vm434 = vcmp.eq.s32.totalorder %v124, 2
    %vm435 = vcmp.eq.s32.totalorder %v125, 2
    %vm436 = vcmp.eq.s32.totalorder %v126, 2
    %vm437 = vcmp.eq.s32.totalorder %v127, 2
    %vm438 = vcmp.eq.s32.totalorder %v128, 2
    %vm439 = vcmp.eq.s32.totalorder %v129, 2
    %vm440 = vcmp.eq.s32.totalorder %v130, 2
    %vm441 = vcmp.eq.s32.totalorder %v131, 2
    %vm442 = vcmp.eq.s32.totalorder %v132, 2
    %vm443 = vcmp.eq.s32.totalorder %v133, 2
    %vm444 = vcmp.eq.s32.totalorder %v134, 2
    %vm445 = vcmp.eq.s32.totalorder %v135, 2
    %s446 = sld [smem:[#allocation6 + $0x3]]
    %v447 = vstv %s446
    %v448 = vsel %vm421, %v447, 0.0
    %v449 = vsel %vm422, %v447, 0.0
    %v450 = vsel %vm423, %v447, 0.0
    %v451 = vsel %vm424, %v447, 0.0
    %v452 = vsel %vm425, %v447, 0.0
    %v453 = vsel %vm426, %v447, 0.0
    %v454 = vsel %vm427, %v447, 0.0
    %v455 = vsel %vm428, %v447, 0.0
    %v456 = vsel %vm429, %v447, 0.0
    %v457 = vsel %vm430, %v447, 0.0
    %v458 = vsel %vm431, %v447, 0.0
    %v459 = vsel %vm432, %v447, 0.0
    %v460 = vsel %vm433, %v447, 0.0
    %v461 = vsel %vm434, %v447, 0.0
    %v462 = vsel %vm435, %v447, 0.0
    %v463 = vsel %vm436, %v447, 0.0
    %v464 = vsel %vm437, %v447, 0.0
    %v465 = vsel %vm438, %v447, 0.0
    %v466 = vsel %vm439, %v447, 0.0
    %v467 = vsel %vm440, %v447, 0.0
    %v468 = vsel %vm441, %v447, 0.0
    %v469 = vsel %vm442, %v447, 0.0
    %v470 = vsel %vm443, %v447, 0.0
    %v471 = vsel %vm444, %v447, 0.0
    %v472 = vsel %vm445, %v447, 0.0
    %v473 = vadd.f32 %v396, %v448
    %v474 = vadd.f32 %v397, %v449
    %v475 = vadd.f32 %v398, %v450
    %v476 = vadd.f32 %v399, %v451
    %v477 = vadd.f32 %v400, %v452
    %v478 = vadd.f32 %v401, %v453
    %v479 = vadd.f32 %v402, %v454
    %v480 = vadd.f32 %v403, %v455
    %v481 = vadd.f32 %v404, %v456
    %v482 = vadd.f32 %v405, %v457
    %v483 = vadd.f32 %v406, %v458
    %v484 = vadd.f32 %v407, %v459
    %v485 = vadd.f32 %v408, %v460
    %v486 = vadd.f32 %v409, %v461
    %v487 = vadd.f32 %v410, %v462
    %v488 = vadd.f32 %v411, %v463
    %v489 = vadd.f32 %v412, %v464
    %v490 = vadd.f32 %v413, %v465
    %v491 = vadd.f32 %v414, %v466
    %v492 = vadd.f32 %v415, %v467
    %v493 = vadd.f32 %v416, %v468
    %v494 = vadd.f32 %v417, %v469
    %v495 = vadd.f32 %v418, %v470
    %v496 = vadd.f32 %v419, %v471
    %v497 = vadd.f32 %v420, %v472
    %v498 = vld [vmem:[#allocation3] sm:$0xff]
    %v499 = vld [vmem:[#allocation3 + $0x8] sm:$0xff]
    %v500 = vld [vmem:[#allocation3 + $0x10] sm:$0xff]
    %v501 = vld [vmem:[#allocation3 + $0x18] sm:$0xff]
    %v502 = vld [vmem:[#allocation3 + $0x20] sm:$0xff]
    %v503 = vld [vmem:[#allocation3 + $0x28] sm:$0xff]
    %v504 = vld [vmem:[#allocation3 + $0x30] sm:$0xff]
    %v505 = vld [vmem:[#allocation3 + $0x38] sm:$0xff]
    %v506 = vld [vmem:[#allocation3 + $0x40] sm:$0xff]
    %v507 = vld [vmem:[#allocation3 + $0x48] sm:$0xff]
    %v508 = vld [vmem:[#allocation3 + $0x50] sm:$0xff]
    %v509 = vld [vmem:[#allocation3 + $0x58] sm:$0xff]
    %v510 = vld [vmem:[#allocation3 + $0x60] sm:$0xff]
    %v511 = vld [vmem:[#allocation3 + $0x68] sm:$0xff]
    %v512 = vld [vmem:[#allocation3 + $0x70] sm:$0xff]
    %v513 = vld [vmem:[#allocation3 + $0x78] sm:$0xff]
    %v514 = vld [vmem:[#allocation3 + $0x80] sm:$0xff]
    %v515 = vld [vmem:[#allocation3 + $0x88] sm:$0xff]
    %v516 = vld [vmem:[#allocation3 + $0x90] sm:$0xff]
    %v517 = vld [vmem:[#allocation3 + $0x98] sm:$0xff]
    %v518 = vld [vmem:[#allocation3 + $0xa0] sm:$0xff]
    %v519 = vld [vmem:[#allocation3 + $0xa8] sm:$0xff]
    %v520 = vld [vmem:[#allocation3 + $0xb0] sm:$0xff]
    %v521 = vld [vmem:[#allocation3 + $0xb8] sm:$0xff]
    %v522 = vld [vmem:[#allocation3 + $0xc0] sm:$0xff]
    %v523 = vld [vmem:[#allocation3 + $0xc8] sm:$0xff]
    %v524 = vld [vmem:[#allocation3 + $0xd0] sm:$0xff]
    %v525 = vld [vmem:[#allocation3 + $0xd8] sm:$0xff]
    %v526 = vld [vmem:[#allocation3 + $0xe0] sm:$0xff]
    %v527 = vld [vmem:[#allocation3 + $0xe8] sm:$0xff]
    %v528 = vld [vmem:[#allocation3 + $0xf0] sm:$0xff]
    %v529 = vld [vmem:[#allocation3 + $0xf8] sm:$0xff]
    %v530 = vld [vmem:[#allocation3 + $0x100] sm:$0xff]
    %v531 = vld [vmem:[#allocation3 + $0x108] sm:$0xff]
    %v532 = vld [vmem:[#allocation3 + $0x110] sm:$0xff]
    %v533 = vld [vmem:[#allocation3 + $0x118] sm:$0xff]
    %v534 = vld [vmem:[#allocation3 + $0x120] sm:$0xff]
    %v535 = vld [vmem:[#allocation3 + $0x128] sm:$0xff]
    %v536 = vld [vmem:[#allocation3 + $0x130] sm:$0xff]
    %v537 = vld [vmem:[#allocation3 + $0x138] sm:$0xff]
    %v538 = vld [vmem:[#allocation3 + $0x140] sm:$0xff]
    %v539 = vld [vmem:[#allocation3 + $0x148] sm:$0xff]
    %v540 = vld [vmem:[#allocation3 + $0x150] sm:$0xff]
    %v541 = vld [vmem:[#allocation3 + $0x158] sm:$0xff]
    %v542 = vld [vmem:[#allocation3 + $0x160] sm:$0xff]
    %v543 = vld [vmem:[#allocation3 + $0x168] sm:$0xff]
    %v544 = vld [vmem:[#allocation3 + $0x170] sm:$0xff]
    %v545 = vld [vmem:[#allocation3 + $0x178] sm:$0xff]
    %v546 = vld [vmem:[#allocation3 + $0x180] sm:$0xff]
    %v547 = vld [vmem:[#allocation3 + $0x188] sm:$0xff]
    %vm548 = vcmask 588800
    %v550 = vsel %vm548, %v165, 0
    %v553 = vsel %vm548, %v167, 0
    %v556 = vsel %vm548, %v169, 0
    %v559 = vsel %vm548, %v171, 0
    %v562 = vsel %vm548, %v173, 0
    %v565 = vsel %vm548, %v175, 0
    %v568 = vsel %vm548, %v177, 0
    %v571 = vsel %vm548, %v179, 0
    %v574 = vsel %vm548, %v181, 0
    %v577 = vsel %vm548, %v183, 0
    %v580 = vsel %vm548, %v185, 0
    %v583 = vsel %vm548, %v187, 0
    %v586 = vsel %vm548, %v189, 0
    %588 = vmatprep.subr.mxu0 %v499
    %589 = vmatpush1.msra.mxu0 %v498
    %590 = vmatprep.subr.mxu0 %v501
    %591 = vmatpush1.msra.mxu0 %v500
    %592 = vmatprep.subr.mxu0 %v503
    %593 = vmatpush1.msra.mxu0 %v502
    %594 = vmatprep.subr.mxu0 %v505
    %595 = vmatpush1.msra.mxu0 %v504
    %596 = vmatprep.subr.mxu0 %v507
    %597 = vmatpush1.msra.mxu0 %v506
    %598 = vmatprep.subr.mxu0 %v509
    %599 = vmatpush1.msra.mxu0 %v508
    %600 = vmatprep.subr.mxu0 %v511
    %601 = vmatpush1.msra.mxu0 %v510
    %602 = vmatprep.subr.mxu0 %v513
    %603 = vmatpush1.msra.mxu0 %v512
    %604 = vmatprep.subr.mxu0 %v515
    %605 = vmatpush1.msra.mxu0 %v514
    %606 = vmatprep.subr.mxu0 %v517
    %607 = vmatpush1.msra.mxu0 %v516
    %608 = vmatprep.subr.mxu0 %v519
    %609 = vmatpush1.msra.mxu0 %v518
    %610 = vmatprep.subr.mxu0 %v521
    %611 = vmatpush1.msra.mxu0 %v520
    %612 = vmatprep.subr.mxu0 %v523
    %613 = vmatpush1.msra.mxu0 %v522
    %614 = vmatprep.subr.mxu0 %v525
    %615 = vmatpush1.msra.mxu0 %v524
    %616 = vmatprep.subr.mxu0 %v527
    %617 = vmatpush1.msra.mxu0 %v526
    %618 = vmatprep.subr.mxu0 %v529
    %619 = vmatpush1.msra.mxu0 %v528
    %620 = vmatprep.subr.mxu0 %v531
    %621 = vmatpush1.msra.mxu0 %v530
    %622 = vmatprep.subr.mxu0 %v533
    %623 = vmatpush1.msra.mxu0 %v532
    %624 = vmatprep.subr.mxu0 %v535
    %625 = vmatpush1.msra.mxu0 %v534
    %626 = vmatprep.subr.mxu0 %v537
    %627 = vmatpush1.msra.mxu0 %v536
    %628 = vmatprep.subr.mxu0 %v539
    %629 = vmatpush1.msra.mxu0 %v538
    %630 = vmatprep.subr.mxu0 %v541
    %631 = vmatpush1.msra.mxu0 %v540
    %632 = vmatprep.subr.mxu0 %v543
    %633 = vmatpush1.msra.mxu0 %v542
    %634 = vmatprep.subr.mxu0 %v545
    %635 = vmatpush1.msra.mxu0 %v544
    %636 = vmatprep.subr.mxu0 %v547
    %637 = vmatpush1.msra.mxu0 %v546
    %638 = vmatprep.subr.mxu0 0.0
    %639 = vmatpush1.msra.mxu0 0.0
    %640 = vmatprep.subr.mxu0 0.0
    %641 = vmatpush1.msra.mxu0 0.0
    %642 = vmatprep.subr.mxu0 0.0
    %643 = vmatpush1.msra.mxu0 0.0
    %644 = vmatprep.subr.mxu0 0.0
    %645 = vmatpush1.msra.mxu0 0.0
    %646 = vmatprep.subr.mxu0 0.0
    %647 = vmatpush1.msra.mxu0 0.0
    %648 = vmatprep.subr.mxu0 0.0
    %649 = vmatpush1.msra.mxu0 0.0
    %650 = vmatprep.subr.mxu0 0.0
    %651 = vmatpush1.msra.mxu0 0.0
    %652 = vmatprep.mubr.f32.mxu0 %v550
    %653 = vmatmul.mubr.f32.gmra.mrb[0].mxu0 %v164
    %v654 = vpop.f32.mrb[0].mxu0
    %v655 = vadd.f32 0.0, %v654
    %v656 = vpop.f32.mrb[0].mxu0
    %v657 = vadd.f32 0.0, %v656
    %658 = vmatprep.mubr.f32.mxu0 %v553
    %659 = vmatmul.mubr.f32.gmra.mrb[0].mxu0 %v166
    %v660 = vpop.f32.mrb[0].mxu0
    %v661 = vadd.f32 0.0, %v660
    %v662 = vpop.f32.mrb[0].mxu0
    %v663 = vadd.f32 0.0, %v662
    %664 = vmatprep.mubr.f32.mxu0 %v556
    %665 = vmatmul.mubr.f32.gmra.mrb[0].mxu0 %v168
    %v666 = vpop.f32.mrb[0].mxu0
    %v667 = vadd.f32 0.0, %v666
    %v668 = vpop.f32.mrb[0].mxu0
    %v669 = vadd.f32 0.0, %v668
    %670 = vmatprep.mubr.f32.mxu0 %v559
    %671 = vmatmul.mubr.f32.gmra.mrb[0].mxu0 %v170
    %v672 = vpop.f32.mrb[0].mxu0
    %v673 = vadd.f32 0.0, %v672
    %v674 = vpop.f32.mrb[0].mxu0
    %v675 = vadd.f32 0.0, %v674
    %676 = vmatprep.mubr.f32.mxu0 %v562
    %677 = vmatmul.mubr.f32.gmra.mrb[0].mxu0 %v172
    %v678 = vpop.f32.mrb[0].mxu0
    %v679 = vadd.f32 0.0, %v678
    %v680 = vpop.f32.mrb[0].mxu0
    %v681 = vadd.f32 0.0, %v680
    %682 = vmatprep.mubr.f32.mxu0 %v565
    %683 = vmatmul.mubr.f32.gmra.mrb[0].mxu0 %v174
    %v684 = vpop.f32.mrb[0].mxu0
    %v685 = vadd.f32 0.0, %v684
    %v686 = vpop.f32.mrb[0].mxu0
    %v687 = vadd.f32 0.0, %v686
    %688 = vmatprep.mubr.f32.mxu0 %v568
    %689 = vmatmul.mubr.f32.gmra.mrb[0].mxu0 %v176
    %v690 = vpop.f32.mrb[0].mxu0
    %v691 = vadd.f32 0.0, %v690
    %v692 = vpop.f32.mrb[0].mxu0
    %v693 = vadd.f32 0.0, %v692
    %694 = vmatprep.mubr.f32.mxu0 %v571
    %695 = vmatmul.mubr.f32.gmra.mrb[0].mxu0 %v178
    %v696 = vpop.f32.mrb[0].mxu0
    %v697 = vadd.f32 0.0, %v696
    %v698 = vpop.f32.mrb[0].mxu0
    %v699 = vadd.f32 0.0, %v698
    %700 = vmatprep.mubr.f32.mxu0 %v574
    %701 = vmatmul.mubr.f32.gmra.mrb[0].mxu0 %v180
    %v702 = vpop.f32.mrb[0].mxu0
    %v703 = vadd.f32 0.0, %v702
    %v704 = vpop.f32.mrb[0].mxu0
    %v705 = vadd.f32 0.0, %v704
    %706 = vmatprep.mubr.f32.mxu0 %v577
    %707 = vmatmul.mubr.f32.gmra.mrb[0].mxu0 %v182
    %v708 = vpop.f32.mrb[0].mxu0
    %v709 = vadd.f32 0.0, %v708
    %v710 = vpop.f32.mrb[0].mxu0
    %v711 = vadd.f32 0.0, %v710
    %712 = vmatprep.mubr.f32.mxu0 %v580
    %713 = vmatmul.mubr.f32.gmra.mrb[0].mxu0 %v184
    %v714 = vpop.f32.mrb[0].mxu0
    %v715 = vadd.f32 0.0, %v714
    %v716 = vpop.f32.mrb[0].mxu0
    %v717 = vadd.f32 0.0, %v716
    %718 = vmatprep.mubr.f32.mxu0 %v583
    %719 = vmatmul.mubr.f32.gmra.mrb[0].mxu0 %v186
    %v720 = vpop.f32.mrb[0].mxu0
    %v721 = vadd.f32 0.0, %v720
    %v722 = vpop.f32.mrb[0].mxu0
    %v723 = vadd.f32 0.0, %v722
    %724 = vmatprep.mubr.f32.mxu0 %v586
    %725 = vmatmul.mubr.f32.gmra.mrb[0].mxu0 %v188
    %v726 = vpop.f32.mrb[0].mxu0
    %v727 = vadd.f32 0.0, %v726
    %v728 = vpop.f32.mrb[0].mxu0
    %v729 = vadd.f32 0.0, %v728
    %730 = vdwg.mxu0
    %v732 = vsel %vm548, %v657, 0
    %v735 = vsel %vm548, %v663, 0
    %v738 = vsel %vm548, %v669, 0
    %v741 = vsel %vm548, %v675, 0
    %v744 = vsel %vm548, %v681, 0
    %v747 = vsel %vm548, %v687, 0
    %v750 = vsel %vm548, %v693, 0
    %v753 = vsel %vm548, %v699, 0
    %v756 = vsel %vm548, %v705, 0
    %v759 = vsel %vm548, %v711, 0
    %v762 = vsel %vm548, %v717, 0
    %v765 = vsel %vm548, %v723, 0
    %v768 = vsel %vm548, %v729, 0
    %770 = vmatprep.subr.mxu0 0.0
    %771 = vmatpush1.msra.mxu0 %v473
    %772 = vmatprep.subr.mxu0 0.0
    %773 = vmatpush1.msra.mxu0 %v474
    %774 = vmatprep.subr.mxu0 0.0
    %775 = vmatpush1.msra.mxu0 %v475
    %776 = vmatprep.subr.mxu0 0.0
    %777 = vmatpush1.msra.mxu0 %v476
    %778 = vmatprep.subr.mxu0 0.0
    %779 = vmatpush1.msra.mxu0 %v477
    %780 = vmatprep.subr.mxu0 0.0
    %781 = vmatpush1.msra.mxu0 %v478
    %782 = vmatprep.subr.mxu0 0.0
    %783 = vmatpush1.msra.mxu0 %v479
    %784 = vmatprep.subr.mxu0 0.0
    %785 = vmatpush1.msra.mxu0 %v480
    %786 = vmatprep.subr.mxu0 0.0
    %787 = vmatpush1.msra.mxu0 %v481
    %788 = vmatprep.subr.mxu0 0.0
    %789 = vmatpush1.msra.mxu0 %v482
    %790 = vmatprep.subr.mxu0 0.0
    %791 = vmatpush1.msra.mxu0 %v483
    %792 = vmatprep.subr.mxu0 0.0
    %793 = vmatpush1.msra.mxu0 %v484
    %794 = vmatprep.subr.mxu0 0.0
    %795 = vmatpush1.msra.mxu0 %v485
    %796 = vmatprep.subr.mxu0 0.0
    %797 = vmatpush1.msra.mxu0 %v486
    %798 = vmatprep.subr.mxu0 0.0
    %799 = vmatpush1.msra.mxu0 %v487
    %800 = vmatprep.subr.mxu0 0.0
    %801 = vmatpush1.msra.mxu0 %v488
    %802 = vmatprep.subr.mxu0 0.0
    %803 = vmatpush1.msra.mxu0 %v489
    %804 = vmatprep.subr.mxu0 0.0
    %805 = vmatpush1.msra.mxu0 %v490
    %806 = vmatprep.subr.mxu0 0.0
    %807 = vmatpush1.msra.mxu0 %v491
    %808 = vmatprep.subr.mxu0 0.0
    %809 = vmatpush1.msra.mxu0 %v492
    %810 = vmatprep.subr.mxu0 0.0
    %811 = vmatpush1.msra.mxu0 %v493
    %812 = vmatprep.subr.mxu0 0.0
    %813 = vmatpush1.msra.mxu0 %v494
    %814 = vmatprep.subr.mxu0 0.0
    %815 = vmatpush1.msra.mxu0 %v495
    %816 = vmatprep.subr.mxu0 0.0
    %817 = vmatpush1.msra.mxu0 %v496
    %818 = vmatprep.subr.mxu0 0.0
    %819 = vmatpush1.msra.mxu0 %v497
    %820 = vmatprep.subr.mxu0 0.0
    %821 = vmatpush1.msra.mxu0 0.0
    %822 = vmatprep.subr.mxu0 0.0
    %823 = vmatpush1.msra.mxu0 0.0
    %824 = vmatprep.subr.mxu0 0.0
    %825 = vmatpush1.msra.mxu0 0.0
    %826 = vmatprep.subr.mxu0 0.0
    %827 = vmatpush1.msra.mxu0 0.0
    %828 = vmatprep.subr.mxu0 0.0
    %829 = vmatpush1.msra.mxu0 0.0
    %830 = vmatprep.subr.mxu0 0.0
    %831 = vmatpush1.msra.mxu0 0.0
    %832 = vmatprep.subr.mxu0 0.0
    %833 = vmatpush1.msra.mxu0 0.0
    %834 = vmatprep.mubr.f32.mxu0 %v732
    %835 = vmatmul.mubr.f32.gmra.mrb[0].mxu0 %v655
    %v836 = vpop.f32.mrb[0].mxu0
    %v837 = vadd.f32 0.0, %v836
    %v838 = vpop.f32.mrb[0].mxu0
    %839 = vmatprep.mubr.f32.mxu0 %v735
    %840 = vmatmul.mubr.f32.gmra.mrb[0].mxu0 %v661
    %v841 = vpop.f32.mrb[0].mxu0
    %v842 = vadd.f32 0.0, %v841
    %v843 = vpop.f32.mrb[0].mxu0
    %844 = vmatprep.mubr.f32.mxu0 %v738
    %845 = vmatmul.mubr.f32.gmra.mrb[0].mxu0 %v667
    %v846 = vpop.f32.mrb[0].mxu0
    %v847 = vadd.f32 0.0, %v846
    %v848 = vpop.f32.mrb[0].mxu0
    %849 = vmatprep.mubr.f32.mxu0 %v741
    %850 = vmatmul.mubr.f32.gmra.mrb[0].mxu0 %v673
    %v851 = vpop.f32.mrb[0].mxu0
    %v852 = vadd.f32 0.0, %v851
    %v853 = vpop.f32.mrb[0].mxu0
    %854 = vmatprep.mubr.f32.mxu0 %v744
    %855 = vmatmul.mubr.f32.gmra.mrb[0].mxu0 %v679
    %v856 = vpop.f32.mrb[0].mxu0
    %v857 = vadd.f32 0.0, %v856
    %v858 = vpop.f32.mrb[0].mxu0
    %859 = vmatprep.mubr.f32.mxu0 %v747
    %860 = vmatmul.mubr.f32.gmra.mrb[0].mxu0 %v685
    %v861 = vpop.f32.mrb[0].mxu0
    %v862 = vadd.f32 0.0, %v861
    %v863 = vpop.f32.mrb[0].mxu0
    %864 = vmatprep.mubr.f32.mxu0 %v750
    %865 = vmatmul.mubr.f32.gmra.mrb[0].mxu0 %v691
    %v866 = vpop.f32.mrb[0].mxu0
    %v867 = vadd.f32 0.0, %v866
    %v868 = vpop.f32.mrb[0].mxu0
    %869 = vmatprep.mubr.f32.mxu0 %v753
    %870 = vmatmul.mubr.f32.gmra.mrb[0].mxu0 %v697
    %v871 = vpop.f32.mrb[0].mxu0
    %v872 = vadd.f32 0.0, %v871
    %v873 = vpop.f32.mrb[0].mxu0
    %874 = vmatprep.mubr.f32.mxu0 %v756
    %875 = vmatmul.mubr.f32.gmra.mrb[0].mxu0 %v703
    %v876 = vpop.f32.mrb[0].mxu0
    %v877 = vadd.f32 0.0, %v876
    %v878 = vpop.f32.mrb[0].mxu0
    %879 = vmatprep.mubr.f32.mxu0 %v759
    %880 = vmatmul.mubr.f32.gmra.mrb[0].mxu0 %v709
    %v881 = vpop.f32.mrb[0].mxu0
    %v882 = vadd.f32 0.0, %v881
    %v883 = vpop.f32.mrb[0].mxu0
    %884 = vmatprep.mubr.f32.mxu0 %v762
    %885 = vmatmul.mubr.f32.gmra.mrb[0].mxu0 %v715
    %v886 = vpop.f32.mrb[0].mxu0
    %v887 = vadd.f32 0.0, %v886
    %v888 = vpop.f32.mrb[0].mxu0
    %889 = vmatprep.mubr.f32.mxu0 %v765
    %890 = vmatmul.mubr.f32.gmra.mrb[0].mxu0 %v721
    %v891 = vpop.f32.mrb[0].mxu0
    %v892 = vadd.f32 0.0, %v891
    %v893 = vpop.f32.mrb[0].mxu0
    %894 = vmatprep.mubr.f32.mxu0 %v768
    %895 = vmatmul.mubr.f32.gmra.mrb[0].mxu0 %v727
    %v896 = vpop.f32.mrb[0].mxu0
    %v897 = vadd.f32 0.0, %v896
    %v898 = vpop.f32.mrb[0].mxu0
    %899 = vdwg.mxu0
    %v900 = vadd.f32 %v137, %v837
    %v901 = vadd.f32 %v137, %v842
    %v902 = vadd.f32 %v137, %v847
    %v903 = vadd.f32 %v137, %v852
    %v904 = vadd.f32 %v137, %v857
    %v905 = vadd.f32 %v137, %v862
    %v906 = vadd.f32 %v137, %v867
    %v907 = vadd.f32 %v137, %v872
    %v908 = vadd.f32 %v137, %v877
    %v909 = vadd.f32 %v137, %v882
    %v910 = vadd.f32 %v137, %v887
    %v911 = vadd.f32 %v137, %v892
    %v912 = vadd.f32 %v137, %v897
    %vm913 = vcmp.eq.s32.totalorder %v72, 0
    %vm914 = vcmp.eq.s32.totalorder %v73, 0
    %vm915 = vcmp.eq.s32.totalorder %v74, 0
    %vm916 = vcmp.eq.s32.totalorder %v75, 0
    %vm917 = vcmp.eq.s32.totalorder %v76, 0
    %vm918 = vcmp.eq.s32.totalorder %v77, 0
    %vm919 = vcmp.eq.s32.totalorder %v78, 0
    %vm920 = vcmp.eq.s32.totalorder %v79, 0
    %vm921 = vcmp.eq.s32.totalorder %v80, 0
    %vm922 = vcmp.eq.s32.totalorder %v81, 0
    %vm923 = vcmp.eq.s32.totalorder %v82, 0
    %vm924 = vcmp.eq.s32.totalorder %v83, 0
    %vm925 = vcmp.eq.s32.totalorder %v84, 0
    %vm926 = vcmp.eq.s32.totalorder %v85, 0
    %vm927 = vcmp.eq.s32.totalorder %v86, 0
    %vm928 = vcmp.eq.s32.totalorder %v87, 0
    %vm929 = vcmp.eq.s32.totalorder %v88, 0
    %vm930 = vcmp.eq.s32.totalorder %v89, 0
    %vm931 = vcmp.eq.s32.totalorder %v90, 0
    %vm932 = vcmp.eq.s32.totalorder %v91, 0
    %vm933 = vcmp.eq.s32.totalorder %v92, 0
    %vm934 = vcmp.eq.s32.totalorder %v93, 0
    %vm935 = vcmp.eq.s32.totalorder %v94, 0
    %vm936 = vcmp.eq.s32.totalorder %v95, 0
    %vm937 = vcmp.eq.s32.totalorder %v96, 0
    %vm938 = vcmp.eq.s32.totalorder %v97, 0
    %v939 = vsel %vm913, 1.0, 0.0
    %v940 = vsel %vm914, 1.0, 0.0
    %v941 = vsel %vm915, 1.0, 0.0
    %v942 = vsel %vm916, 1.0, 0.0
    %v943 = vsel %vm917, 1.0, 0.0
    %v944 = vsel %vm918, 1.0, 0.0
    %v945 = vsel %vm919, 1.0, 0.0
    %v946 = vsel %vm920, 1.0, 0.0
    %v947 = vsel %vm921, 1.0, 0.0
    %v948 = vsel %vm922, 1.0, 0.0
    %v949 = vsel %vm923, 1.0, 0.0
    %v950 = vsel %vm924, 1.0, 0.0
    %v951 = vsel %vm925, 1.0, 0.0
    %v952 = vsel %vm926, 1.0, 0.0
    %v953 = vsel %vm927, 1.0, 0.0
    %v954 = vsel %vm928, 1.0, 0.0
    %v955 = vsel %vm929, 1.0, 0.0
    %v956 = vsel %vm930, 1.0, 0.0
    %v957 = vsel %vm931, 1.0, 0.0
    %v958 = vsel %vm932, 1.0, 0.0
    %v959 = vsel %vm933, 1.0, 0.0
    %v960 = vsel %vm934, 1.0, 0.0
    %v961 = vsel %vm935, 1.0, 0.0
    %v962 = vsel %vm936, 1.0, 0.0
    %v963 = vsel %vm937, 1.0, 0.0
    %v964 = vsel %vm938, 1.0, 0.0
    %s965 = sld [smem:[#allocation6 + $0x80]]
    %v966 = vstv %s965
    %v967 = vsel %vm190, %v966, 0.0
    %v968 = vsel %vm191, %v966, 0.0
    %v969 = vsel %vm192, %v966, 0.0
    %v970 = vsel %vm193, %v966, 0.0
    %v971 = vsel %vm194, %v966, 0.0
    %v972 = vsel %vm195, %v966, 0.0
    %v973 = vsel %vm196, %v966, 0.0
    %v974 = vsel %vm197, %v966, 0.0
    %v975 = vsel %vm198, %v966, 0.0
    %v976 = vsel %vm199, %v966, 0.0
    %v977 = vsel %vm200, %v966, 0.0
    %v978 = vsel %vm201, %v966, 0.0
    %v979 = vsel %vm202, %v966, 0.0
    %v980 = vsel %vm203, %v966, 0.0
    %v981 = vsel %vm204, %v966, 0.0
    %v982 = vsel %vm205, %v966, 0.0
    %v983 = vsel %vm206, %v966, 0.0
    %v984 = vsel %vm207, %v966, 0.0
    %v985 = vsel %vm208, %v966, 0.0
    %v986 = vsel %vm209, %v966, 0.0
    %v987 = vsel %vm210, %v966, 0.0
    %v988 = vsel %vm211, %v966, 0.0
    %v989 = vsel %vm212, %v966, 0.0
    %v990 = vsel %vm213, %v966, 0.0
    %v991 = vsel %vm214, %v966, 0.0
    %v992 = vadd.f32 %v967, 0.0
    %v993 = vadd.f32 %v968, 0.0
    %v994 = vadd.f32 %v969, 0.0
    %v995 = vadd.f32 %v970, 0.0
    %v996 = vadd.f32 %v971, 0.0
    %v997 = vadd.f32 %v972, 0.0
    %v998 = vadd.f32 %v973, 0.0
    %v999 = vadd.f32 %v974, 0.0
    %v1000 = vadd.f32 %v975, 0.0
    %v1001 = vadd.f32 %v976, 0.0
    %v1002 = vadd.f32 %v977, 0.0
    %v1003 = vadd.f32 %v978, 0.0
    %v1004 = vadd.f32 %v979, 0.0
    %v1005 = vadd.f32 %v980, 0.0
    %v1006 = vadd.f32 %v981, 0.0
    %v1007 = vadd.f32 %v982, 0.0
    %v1008 = vadd.f32 %v983, 0.0
    %v1009 = vadd.f32 %v984, 0.0
    %v1010 = vadd.f32 %v985, 0.0
    %v1011 = vadd.f32 %v986, 0.0
    %v1012 = vadd.f32 %v987, 0.0
    %v1013 = vadd.f32 %v988, 0.0
    %v1014 = vadd.f32 %v989, 0.0
    %v1015 = vadd.f32 %v990, 0.0
    %v1016 = vadd.f32 %v991, 0.0
    %s1017 = sld [smem:[#allocation6 + $0x81]]
    %v1018 = vstv %s1017
    %v1019 = vsel %vm267, %v1018, 0.0
    %v1020 = vsel %vm268, %v1018, 0.0
    %v1021 = vsel %vm269, %v1018, 0.0
    %v1022 = vsel %vm270, %v1018, 0.0
    %v1023 = vsel %vm271, %v1018, 0.0
    %v1024 = vsel %vm272, %v1018, 0.0
    %v1025 = vsel %vm273, %v1018, 0.0
    %v1026 = vsel %vm274, %v1018, 0.0
    %v1027 = vsel %vm275, %v1018, 0.0
    %v1028 = vsel %vm276, %v1018, 0.0
    %v1029 = vsel %vm277, %v1018, 0.0
    %v1030 = vsel %vm278, %v1018, 0.0
    %v1031 = vsel %vm279, %v1018, 0.0
    %v1032 = vsel %vm280, %v1018, 0.0
    %v1033 = vsel %vm281, %v1018, 0.0
    %v1034 = vsel %vm282, %v1018, 0.0
    %v1035 = vsel %vm283, %v1018, 0.0
    %v1036 = vsel %vm284, %v1018, 0.0
    %v1037 = vsel %vm285, %v1018, 0.0
    %v1038 = vsel %vm286, %v1018, 0.0
    %v1039 = vsel %vm287, %v1018, 0.0
    %v1040 = vsel %vm288, %v1018, 0.0
    %v1041 = vsel %vm289, %v1018, 0.0
    %v1042 = vsel %vm290, %v1018, 0.0
    %v1043 = vsel %vm291, %v1018, 0.0
    %v1044 = vadd.f32 %v992, %v1019
    %v1045 = vadd.f32 %v993, %v1020
    %v1046 = vadd.f32 %v994, %v1021
    %v1047 = vadd.f32 %v995, %v1022
    %v1048 = vadd.f32 %v996, %v1023
    %v1049 = vadd.f32 %v997, %v1024
    %v1050 = vadd.f32 %v998, %v1025
    %v1051 = vadd.f32 %v999, %v1026
    %v1052 = vadd.f32 %v1000, %v1027
    %v1053 = vadd.f32 %v1001, %v1028
    %v1054 = vadd.f32 %v1002, %v1029
    %v1055 = vadd.f32 %v1003, %v1030
    %v1056 = vadd.f32 %v1004, %v1031
    %v1057 = vadd.f32 %v1005, %v1032
    %v1058 = vadd.f32 %v1006, %v1033
    %v1059 = vadd.f32 %v1007, %v1034
    %v1060 = vadd.f32 %v1008, %v1035
    %v1061 = vadd.f32 %v1009, %v1036
    %v1062 = vadd.f32 %v1010, %v1037
    %v1063 = vadd.f32 %v1011, %v1038
    %v1064 = vadd.f32 %v1012, %v1039
    %v1065 = vadd.f32 %v1013, %v1040
    %v1066 = vadd.f32 %v1014, %v1041
    %v1067 = vadd.f32 %v1015, %v1042
    %v1068 = vadd.f32 %v1016, %v1043
    %s1069 = sld [smem:[#allocation6 + $0x82]]
    %v1070 = vstv %s1069
    %v1071 = vsel %vm344, %v1070, 0.0
    %v1072 = vsel %vm345, %v1070, 0.0
    %v1073 = vsel %vm346, %v1070, 0.0
    %v1074 = vsel %vm347, %v1070, 0.0
    %v1075 = vsel %vm348, %v1070, 0.0
    %v1076 = vsel %vm349, %v1070, 0.0
    %v1077 = vsel %vm350, %v1070, 0.0
    %v1078 = vsel %vm351, %v1070, 0.0
    %v1079 = vsel %vm352, %v1070, 0.0
    %v1080 = vsel %vm353, %v1070, 0.0
    %v1081 = vsel %vm354, %v1070, 0.0
    %v1082 = vsel %vm355, %v1070, 0.0
    %v1083 = vsel %vm356, %v1070, 0.0
    %v1084 = vsel %vm357, %v1070, 0.0
    %v1085 = vsel %vm358, %v1070, 0.0
    %v1086 = vsel %vm359, %v1070, 0.0
    %v1087 = vsel %vm360, %v1070, 0.0
    %v1088 = vsel %vm361, %v1070, 0.0
    %v1089 = vsel %vm362, %v1070, 0.0
    %v1090 = vsel %vm363, %v1070, 0.0
    %v1091 = vsel %vm364, %v1070, 0.0
    %v1092 = vsel %vm365, %v1070, 0.0
    %v1093 = vsel %vm366, %v1070, 0.0
    %v1094 = vsel %vm367, %v1070, 0.0
    %v1095 = vsel %vm368, %v1070, 0.0
    %v1096 = vadd.f32 %v1044, %v1071
    %v1097 = vadd.f32 %v1045, %v1072
    %v1098 = vadd.f32 %v1046, %v1073
    %v1099 = vadd.f32 %v1047, %v1074
    %v1100 = vadd.f32 %v1048, %v1075
    %v1101 = vadd.f32 %v1049, %v1076
    %v1102 = vadd.f32 %v1050, %v1077
    %v1103 = vadd.f32 %v1051, %v1078
    %v1104 = vadd.f32 %v1052, %v1079
    %v1105 = vadd.f32 %v1053, %v1080
    %v1106 = vadd.f32 %v1054, %v1081
    %v1107 = vadd.f32 %v1055, %v1082
    %v1108 = vadd.f32 %v1056, %v1083
    %v1109 = vadd.f32 %v1057, %v1084
    %v1110 = vadd.f32 %v1058, %v1085
    %v1111 = vadd.f32 %v1059, %v1086
    %v1112 = vadd.f32 %v1060, %v1087
    %v1113 = vadd.f32 %v1061, %v1088
    %v1114 = vadd.f32 %v1062, %v1089
    %v1115 = vadd.f32 %v1063, %v1090
    %v1116 = vadd.f32 %v1064, %v1091
    %v1117 = vadd.f32 %v1065, %v1092
    %v1118 = vadd.f32 %v1066, %v1093
    %v1119 = vadd.f32 %v1067, %v1094
    %v1120 = vadd.f32 %v1068, %v1095
    %s1121 = sld [smem:[#allocation6 + $0x83]]
    %v1122 = vstv %s1121
    %v1123 = vsel %vm421, %v1122, 0.0
    %v1124 = vsel %vm422, %v1122, 0.0
    %v1125 = vsel %vm423, %v1122, 0.0
    %v1126 = vsel %vm424, %v1122, 0.0
    %v1127 = vsel %vm425, %v1122, 0.0
    %v1128 = vsel %vm426, %v1122, 0.0
    %v1129 = vsel %vm427, %v1122, 0.0
    %v1130 = vsel %vm428, %v1122, 0.0
    %v1131 = vsel %vm429, %v1122, 0.0
    %v1132 = vsel %vm430, %v1122, 0.0
    %v1133 = vsel %vm431, %v1122, 0.0
    %v1134 = vsel %vm432, %v1122, 0.0
    %v1135 = vsel %vm433, %v1122, 0.0
    %v1136 = vsel %vm434, %v1122, 0.0
    %v1137 = vsel %vm435, %v1122, 0.0
    %v1138 = vsel %vm436, %v1122, 0.0
    %v1139 = vsel %vm437, %v1122, 0.0
    %v1140 = vsel %vm438, %v1122, 0.0
    %v1141 = vsel %vm439, %v1122, 0.0
    %v1142 = vsel %vm440, %v1122, 0.0
    %v1143 = vsel %vm441, %v1122, 0.0
    %v1144 = vsel %vm442, %v1122, 0.0
    %v1145 = vsel %vm443, %v1122, 0.0
    %v1146 = vsel %vm444, %v1122, 0.0
    %v1147 = vsel %vm445, %v1122, 0.0
    %v1148 = vadd.f32 %v1096, %v1123
    %v1149 = vadd.f32 %v1097, %v1124
    %v1150 = vadd.f32 %v1098, %v1125
    %v1151 = vadd.f32 %v1099, %v1126
    %v1152 = vadd.f32 %v1100, %v1127
    %v1153 = vadd.f32 %v1101, %v1128
    %v1154 = vadd.f32 %v1102, %v1129
    %v1155 = vadd.f32 %v1103, %v1130
    %v1156 = vadd.f32 %v1104, %v1131
    %v1157 = vadd.f32 %v1105, %v1132
    %v1158 = vadd.f32 %v1106, %v1133
    %v1159 = vadd.f32 %v1107, %v1134
    %v1160 = vadd.f32 %v1108, %v1135
    %v1161 = vadd.f32 %v1109, %v1136
    %v1162 = vadd.f32 %v1110, %v1137
    %v1163 = vadd.f32 %v1111, %v1138
    %v1164 = vadd.f32 %v1112, %v1139
    %v1165 = vadd.f32 %v1113, %v1140
    %v1166 = vadd.f32 %v1114, %v1141
    %v1167 = vadd.f32 %v1115, %v1142
    %v1168 = vadd.f32 %v1116, %v1143
    %v1169 = vadd.f32 %v1117, %v1144
    %v1170 = vadd.f32 %v1118, %v1145
    %v1171 = vadd.f32 %v1119, %v1146
    %v1172 = vadd.f32 %v1120, %v1147
    %v1174 = vsel %vm548, %v940, 0
    %v1177 = vsel %vm548, %v942, 0
    %v1180 = vsel %vm548, %v944, 0
    %v1183 = vsel %vm548, %v946, 0
    %v1186 = vsel %vm548, %v948, 0
    %v1189 = vsel %vm548, %v950, 0
    %v1192 = vsel %vm548, %v952, 0
    %v1195 = vsel %vm548, %v954, 0
    %v1198 = vsel %vm548, %v956, 0
    %v1201 = vsel %vm548, %v958, 0
    %v1204 = vsel %vm548, %v960, 0
    %v1207 = vsel %vm548, %v962, 0
    %v1210 = vsel %vm548, %v964, 0
    %1212 = vmatprep.subr.mxu0 %v499
    %1213 = vmatpush1.msra.mxu0 %v498
    %1214 = vmatprep.subr.mxu0 %v501
    %1215 = vmatpush1.msra.mxu0 %v500
    %1216 = vmatprep.subr.mxu0 %v503
    %1217 = vmatpush1.msra.mxu0 %v502
    %1218 = vmatprep.subr.mxu0 %v505
    %1219 = vmatpush1.msra.mxu0 %v504
    %1220 = vmatprep.subr.mxu0 %v507
    %1221 = vmatpush1.msra.mxu0 %v506
    %1222 = vmatprep.subr.mxu0 %v509
    %1223 = vmatpush1.msra.mxu0 %v508
    %1224 = vmatprep.subr.mxu0 %v511
    %1225 = vmatpush1.msra.mxu0 %v510
    %1226 = vmatprep.subr.mxu0 %v513
    %1227 = vmatpush1.msra.mxu0 %v512
    %1228 = vmatprep.subr.mxu0 %v515
    %1229 = vmatpush1.msra.mxu0 %v514
    %1230 = vmatprep.subr.mxu0 %v517
    %1231 = vmatpush1.msra.mxu0 %v516
    %1232 = vmatprep.subr.mxu0 %v519
    %1233 = vmatpush1.msra.mxu0 %v518
    %1234 = vmatprep.subr.mxu0 %v521
    %1235 = vmatpush1.msra.mxu0 %v520
    %1236 = vmatprep.subr.mxu0 %v523
    %1237 = vmatpush1.msra.mxu0 %v522
    %1238 = vmatprep.subr.mxu0 %v525
    %1239 = vmatpush1.msra.mxu0 %v524
    %1240 = vmatprep.subr.mxu0 %v527
    %1241 = vmatpush1.msra.mxu0 %v526
    %1242 = vmatprep.subr.mxu0 %v529
    %1243 = vmatpush1.msra.mxu0 %v528
    %1244 = vmatprep.subr.mxu0 %v531
    %1245 = vmatpush1.msra.mxu0 %v530
    %1246 = vmatprep.subr.mxu0 %v533
    %1247 = vmatpush1.msra.mxu0 %v532
    %1248 = vmatprep.subr.mxu0 %v535
    %1249 = vmatpush1.msra.mxu0 %v534
    %1250 = vmatprep.subr.mxu0 %v537
    %1251 = vmatpush1.msra.mxu0 %v536
    %1252 = vmatprep.subr.mxu0 %v539
    %1253 = vmatpush1.msra.mxu0 %v538
    %1254 = vmatprep.subr.mxu0 %v541
    %1255 = vmatpush1.msra.mxu0 %v540
    %1256 = vmatprep.subr.mxu0 %v543
    %1257 = vmatpush1.msra.mxu0 %v542
    %1258 = vmatprep.subr.mxu0 %v545
    %1259 = vmatpush1.msra.mxu0 %v544
    %1260 = vmatprep.subr.mxu0 %v547
    %1261 = vmatpush1.msra.mxu0 %v546
    %1262 = vmatprep.subr.mxu0 0.0
    %1263 = vmatpush1.msra.mxu0 0.0
    %1264 = vmatprep.subr.mxu0 0.0
    %1265 = vmatpush1.msra.mxu0 0.0
    %1266 = vmatprep.subr.mxu0 0.0
    %1267 = vmatpush1.msra.mxu0 0.0
    %1268 = vmatprep.subr.mxu0 0.0
    %1269 = vmatpush1.msra.mxu0 0.0
    %1270 = vmatprep.subr.mxu0 0.0
    %1271 = vmatpush1.msra.mxu0 0.0
    %1272 = vmatprep.subr.mxu0 0.0
    %1273 = vmatpush1.msra.mxu0 0.0
    %1274 = vmatprep.subr.mxu0 0.0
    %1275 = vmatpush1.msra.mxu0 0.0
    %1276 = vmatprep.mubr.f32.mxu0 %v1174
    %1277 = vmatmul.mubr.f32.gmra.mrb[0].mxu0 %v939
    %v1278 = vpop.f32.mrb[0].mxu0
    %v1279 = vadd.f32 0.0, %v1278
    %v1280 = vpop.f32.mrb[0].mxu0
    %v1281 = vadd.f32 0.0, %v1280
    %1282 = vmatprep.mubr.f32.mxu0 %v1177
    %1283 = vmatmul.mubr.f32.gmra.mrb[0].mxu0 %v941
    %v1284 = vpop.f32.mrb[0].mxu0
    %v1285 = vadd.f32 0.0, %v1284
    %v1286 = vpop.f32.mrb[0].mxu0
    %v1287 = vadd.f32 0.0, %v1286
    %1288 = vmatprep.mubr.f32.mxu0 %v1180
    %1289 = vmatmul.mubr.f32.gmra.mrb[0].mxu0 %v943
    %v1290 = vpop.f32.mrb[0].mxu0
    %v1291 = vadd.f32 0.0, %v1290
    %v1292 = vpop.f32.mrb[0].mxu0
    %v1293 = vadd.f32 0.0, %v1292
    %1294 = vmatprep.mubr.f32.mxu0 %v1183
    %1295 = vmatmul.mubr.f32.gmra.mrb[0].mxu0 %v945
    %v1296 = vpop.f32.mrb[0].mxu0
    %v1297 = vadd.f32 0.0, %v1296
    %v1298 = vpop.f32.mrb[0].mxu0
    %v1299 = vadd.f32 0.0, %v1298
    %1300 = vmatprep.mubr.f32.mxu0 %v1186
    %1301 = vmatmul.mubr.f32.gmra.mrb[0].mxu0 %v947
    %v1302 = vpop.f32.mrb[0].mxu0
    %v1303 = vadd.f32 0.0, %v1302
    %v1304 = vpop.f32.mrb[0].mxu0
    %v1305 = vadd.f32 0.0, %v1304
    %1306 = vmatprep.mubr.f32.mxu0 %v1189
    %1307 = vmatmul.mubr.f32.gmra.mrb[0].mxu0 %v949
    %v1308 = vpop.f32.mrb[0].mxu0
    %v1309 = vadd.f32 0.0, %v1308
    %v1310 = vpop.f32.mrb[0].mxu0
    %v1311 = vadd.f32 0.0, %v1310
    %1312 = vmatprep.mubr.f32.mxu0 %v1192
    %1313 = vmatmul.mubr.f32.gmra.mrb[0].mxu0 %v951
    %v1314 = vpop.f32.mrb[0].mxu0
    %v1315 = vadd.f32 0.0, %v1314
    %v1316 = vpop.f32.mrb[0].mxu0
    %v1317 = vadd.f32 0.0, %v1316
    %1318 = vmatprep.mubr.f32.mxu0 %v1195
    %1319 = vmatmul.mubr.f32.gmra.mrb[0].mxu0 %v953
    %v1320 = vpop.f32.mrb[0].mxu0
    %v1321 = vadd.f32 0.0, %v1320
    %v1322 = vpop.f32.mrb[0].mxu0
    %v1323 = vadd.f32 0.0, %v1322
    %1324 = vmatprep.mubr.f32.mxu0 %v1198
    %1325 = vmatmul.mubr.f32.gmra.mrb[0].mxu0 %v955
    %v1326 = vpop.f32.mrb[0].mxu0
    %v1327 = vadd.f32 0.0, %v1326
    %v1328 = vpop.f32.mrb[0].mxu0
    %v1329 = vadd.f32 0.0, %v1328
    %1330 = vmatprep.mubr.f32.mxu0 %v1201
    %1331 = vmatmul.mubr.f32.gmra.mrb[0].mxu0 %v957
    %v1332 = vpop.f32.mrb[0].mxu0
    %v1333 = vadd.f32 0.0, %v1332
    %v1334 = vpop.f32.mrb[0].mxu0
    %v1335 = vadd.f32 0.0, %v1334
    %1336 = vmatprep.mubr.f32.mxu0 %v1204
    %1337 = vmatmul.mubr.f32.gmra.mrb[0].mxu0 %v959
    %v1338 = vpop.f32.mrb[0].mxu0
    %v1339 = vadd.f32 0.0, %v1338
    %v1340 = vpop.f32.mrb[0].mxu0
    %v1341 = vadd.f32 0.0, %v1340
    %1342 = vmatprep.mubr.f32.mxu0 %v1207
    %1343 = vmatmul.mubr.f32.gmra.mrb[0].mxu0 %v961
    %v1344 = vpop.f32.mrb[0].mxu0
    %v1345 = vadd.f32 0.0, %v1344
    %v1346 = vpop.f32.mrb[0].mxu0
    %v1347 = vadd.f32 0.0, %v1346
    %1348 = vmatprep.mubr.f32.mxu0 %v1210
    %1349 = vmatmul.mubr.f32.gmra.mrb[0].mxu0 %v963
    %v1350 = vpop.f32.mrb[0].mxu0
    %v1351 = vadd.f32 0.0, %v1350
    %v1352 = vpop.f32.mrb[0].mxu0
    %v1353 = vadd.f32 0.0, %v1352
    %1354 = vdwg.mxu0
    %v1356 = vsel %vm548, %v1281, 0
    %v1359 = vsel %vm548, %v1287, 0
    %v1362 = vsel %vm548, %v1293, 0
    %v1365 = vsel %vm548, %v1299, 0
    %v1368 = vsel %vm548, %v1305, 0
    %v1371 = vsel %vm548, %v1311, 0
    %v1374 = vsel %vm548, %v1317, 0
    %v1377 = vsel %vm548, %v1323, 0
    %v1380 = vsel %vm548, %v1329, 0
    %v1383 = vsel %vm548, %v1335, 0
    %v1386 = vsel %vm548, %v1341, 0
    %v1389 = vsel %vm548, %v1347, 0
    %v1392 = vsel %vm548, %v1353, 0
    %1394 = vmatprep.subr.mxu0 0.0
    %1395 = vmatpush1.msra.mxu0 %v1148
    %1396 = vmatprep.subr.mxu0 0.0
    %1397 = vmatpush1.msra.mxu0 %v1149
    %1398 = vmatprep.subr.mxu0 0.0
    %1399 = vmatpush1.msra.mxu0 %v1150
    %1400 = vmatprep.subr.mxu0 0.0
    %1401 = vmatpush1.msra.mxu0 %v1151
    %1402 = vmatprep.subr.mxu0 0.0
    %1403 = vmatpush1.msra.mxu0 %v1152
    %1404 = vmatprep.subr.mxu0 0.0
    %1405 = vmatpush1.msra.mxu0 %v1153
    %1406 = vmatprep.subr.mxu0 0.0
    %1407 = vmatpush1.msra.mxu0 %v1154
    %1408 = vmatprep.subr.mxu0 0.0
    %1409 = vmatpush1.msra.mxu0 %v1155
    %1410 = vmatprep.subr.mxu0 0.0
    %1411 = vmatpush1.msra.mxu0 %v1156
    %1412 = vmatprep.subr.mxu0 0.0
    %1413 = vmatpush1.msra.mxu0 %v1157
    %1414 = vmatprep.subr.mxu0 0.0
    %1415 = vmatpush1.msra.mxu0 %v1158
    %1416 = vmatprep.subr.mxu0 0.0
    %1417 = vmatpush1.msra.mxu0 %v1159
    %1418 = vmatprep.subr.mxu0 0.0
    %1419 = vmatpush1.msra.mxu0 %v1160
    %1420 = vmatprep.subr.mxu0 0.0
    %1421 = vmatpush1.msra.mxu0 %v1161
    %1422 = vmatprep.subr.mxu0 0.0
    %1423 = vmatpush1.msra.mxu0 %v1162
    %1424 = vmatprep.subr.mxu0 0.0
    %1425 = vmatpush1.msra.mxu0 %v1163
    %1426 = vmatprep.subr.mxu0 0.0
    %1427 = vmatpush1.msra.mxu0 %v1164
    %1428 = vmatprep.subr.mxu0 0.0
    %1429 = vmatpush1.msra.mxu0 %v1165
    %1430 = vmatprep.subr.mxu0 0.0
    %1431 = vmatpush1.msra.mxu0 %v1166
    %1432 = vmatprep.subr.mxu0 0.0
    %1433 = vmatpush1.msra.mxu0 %v1167
    %1434 = vmatprep.subr.mxu0 0.0
    %1435 = vmatpush1.msra.mxu0 %v1168
    %1436 = vmatprep.subr.mxu0 0.0
    %1437 = vmatpush1.msra.mxu0 %v1169
    %1438 = vmatprep.subr.mxu0 0.0
    %1439 = vmatpush1.msra.mxu0 %v1170
    %1440 = vmatprep.subr.mxu0 0.0
    %1441 = vmatpush1.msra.mxu0 %v1171
    %1442 = vmatprep.subr.mxu0 0.0
    %1443 = vmatpush1.msra.mxu0 %v1172
    %1444 = vmatprep.subr.mxu0 0.0
    %1445 = vmatpush1.msra.mxu0 0.0
    %1446 = vmatprep.subr.mxu0 0.0
    %1447 = vmatpush1.msra.mxu0 0.0
    %1448 = vmatprep.subr.mxu0 0.0
    %1449 = vmatpush1.msra.mxu0 0.0
    %1450 = vmatprep.subr.mxu0 0.0
    %1451 = vmatpush1.msra.mxu0 0.0
    %1452 = vmatprep.subr.mxu0 0.0
    %1453 = vmatpush1.msra.mxu0 0.0
    %1454 = vmatprep.subr.mxu0 0.0
    %1455 = vmatpush1.msra.mxu0 0.0
    %1456 = vmatprep.subr.mxu0 0.0
    %1457 = vmatpush1.msra.mxu0 0.0
    %1458 = vmatprep.mubr.f32.mxu0 %v1356
    %1459 = vmatmul.mubr.f32.gmra.mrb[0].mxu0 %v1279
    %v1460 = vpop.f32.mrb[0].mxu0
    %v1461 = vadd.f32 0.0, %v1460
    %v1462 = vpop.f32.mrb[0].mxu0
    %1463 = vmatprep.mubr.f32.mxu0 %v1359
    %1464 = vmatmul.mubr.f32.gmra.mrb[0].mxu0 %v1285
    %v1465 = vpop.f32.mrb[0].mxu0
    %v1466 = vadd.f32 0.0, %v1465
    %v1467 = vpop.f32.mrb[0].mxu0
    %1468 = vmatprep.mubr.f32.mxu0 %v1362
    %1469 = vmatmul.mubr.f32.gmra.mrb[0].mxu0 %v1291
    %v1470 = vpop.f32.mrb[0].mxu0
    %v1471 = vadd.f32 0.0, %v1470
    %v1472 = vpop.f32.mrb[0].mxu0
    %1473 = vmatprep.mubr.f32.mxu0 %v1365
    %1474 = vmatmul.mubr.f32.gmra.mrb[0].mxu0 %v1297
    %v1475 = vpop.f32.mrb[0].mxu0
    %v1476 = vadd.f32 0.0, %v1475
    %v1477 = vpop.f32.mrb[0].mxu0
    %1478 = vmatprep.mubr.f32.mxu0 %v1368
    %1479 = vmatmul.mubr.f32.gmra.mrb[0].mxu0 %v1303
    %v1480 = vpop.f32.mrb[0].mxu0
    %v1481 = vadd.f32 0.0, %v1480
    %v1482 = vpop.f32.mrb[0].mxu0
    %1483 = vmatprep.mubr.f32.mxu0 %v1371
    %1484 = vmatmul.mubr.f32.gmra.mrb[0].mxu0 %v1309
    %v1485 = vpop.f32.mrb[0].mxu0
    %v1486 = vadd.f32 0.0, %v1485
    %v1487 = vpop.f32.mrb[0].mxu0
    %1488 = vmatprep.mubr.f32.mxu0 %v1374
    %1489 = vmatmul.mubr.f32.gmra.mrb[0].mxu0 %v1315
    %v1490 = vpop.f32.mrb[0].mxu0
    %v1491 = vadd.f32 0.0, %v1490
    %v1492 = vpop.f32.mrb[0].mxu0
    %1493 = vmatprep.mubr.f32.mxu0 %v1377
    %1494 = vmatmul.mubr.f32.gmra.mrb[0].mxu0 %v1321
    %v1495 = vpop.f32.mrb[0].mxu0
    %v1496 = vadd.f32 0.0, %v1495
    %v1497 = vpop.f32.mrb[0].mxu0
    %1498 = vmatprep.mubr.f32.mxu0 %v1380
    %1499 = vmatmul.mubr.f32.gmra.mrb[0].mxu0 %v1327
    %v1500 = vpop.f32.mrb[0].mxu0
    %v1501 = vadd.f32 0.0, %v1500
    %v1502 = vpop.f32.mrb[0].mxu0
    %1503 = vmatprep.mubr.f32.mxu0 %v1383
    %1504 = vmatmul.mubr.f32.gmra.mrb[0].mxu0 %v1333
    %v1505 = vpop.f32.mrb[0].mxu0
    %v1506 = vadd.f32 0.0, %v1505
    %v1507 = vpop.f32.mrb[0].mxu0
    %1508 = vmatprep.mubr.f32.mxu0 %v1386
    %1509 = vmatmul.mubr.f32.gmra.mrb[0].mxu0 %v1339
    %v1510 = vpop.f32.mrb[0].mxu0
    %v1511 = vadd.f32 0.0, %v1510
    %v1512 = vpop.f32.mrb[0].mxu0
    %1513 = vmatprep.mubr.f32.mxu0 %v1389
    %1514 = vmatmul.mubr.f32.gmra.mrb[0].mxu0 %v1345
    %v1515 = vpop.f32.mrb[0].mxu0
    %v1516 = vadd.f32 0.0, %v1515
    %v1517 = vpop.f32.mrb[0].mxu0
    %1518 = vmatprep.mubr.f32.mxu0 %v1392
    %1519 = vmatmul.mubr.f32.gmra.mrb[0].mxu0 %v1351
    %v1520 = vpop.f32.mrb[0].mxu0
    %v1521 = vadd.f32 0.0, %v1520
    %v1522 = vpop.f32.mrb[0].mxu0
    %1523 = vdwg.mxu0
    %v1524 = vadd.f32 %v900, %v1461
    %v1525 = vadd.f32 %v901, %v1466
    %v1526 = vadd.f32 %v902, %v1471
    %v1527 = vadd.f32 %v903, %v1476
    %v1528 = vadd.f32 %v904, %v1481
    %v1529 = vadd.f32 %v905, %v1486
    %v1530 = vadd.f32 %v906, %v1491
    %v1531 = vadd.f32 %v907, %v1496
    %v1532 = vadd.f32 %v908, %v1501
    %v1533 = vadd.f32 %v909, %v1506
    %v1534 = vadd.f32 %v910, %v1511
    %v1535 = vadd.f32 %v911, %v1516
    %v1536 = vadd.f32 %v912, %v1521
    %vm1537 = vcmp.eq.s32.totalorder %v72, 1
    %vm1538 = vcmp.eq.s32.totalorder %v73, 1
    %vm1539 = vcmp.eq.s32.totalorder %v74, 1
    %vm1540 = vcmp.eq.s32.totalorder %v75, 1
    %vm1541 = vcmp.eq.s32.totalorder %v76, 1
    %vm1542 = vcmp.eq.s32.totalorder %v77, 1
    %vm1543 = vcmp.eq.s32.totalorder %v78, 1
    %vm1544 = vcmp.eq.s32.totalorder %v79, 1
    %vm1545 = vcmp.eq.s32.totalorder %v80, 1
    %vm1546 = vcmp.eq.s32.totalorder %v81, 1
    %vm1547 = vcmp.eq.s32.totalorder %v82, 1
    %vm1548 = vcmp.eq.s32.totalorder %v83, 1
    %vm1549 = vcmp.eq.s32.totalorder %v84, 1
    %vm1550 = vcmp.eq.s32.totalorder %v85, 1
    %vm1551 = vcmp.eq.s32.totalorder %v86, 1
    %vm1552 = vcmp.eq.s32.totalorder %v87, 1
    %vm1553 = vcmp.eq.s32.totalorder %v88, 1
    %vm1554 = vcmp.eq.s32.totalorder %v89, 1
    %vm1555 = vcmp.eq.s32.totalorder %v90, 1
    %vm1556 = vcmp.eq.s32.totalorder %v91, 1
    %vm1557 = vcmp.eq.s32.totalorder %v92, 1
    %vm1558 = vcmp.eq.s32.totalorder %v93, 1
    %vm1559 = vcmp.eq.s32.totalorder %v94, 1
    %vm1560 = vcmp.eq.s32.totalorder %v95, 1
    %vm1561 = vcmp.eq.s32.totalorder %v96, 1
    %vm1562 = vcmp.eq.s32.totalorder %v97, 1
    %v1563 = vsel %vm1537, 1.0, 0.0
    %v1564 = vsel %vm1538, 1.0, 0.0
    %v1565 = vsel %vm1539, 1.0, 0.0
    %v1566 = vsel %vm1540, 1.0, 0.0
    %v1567 = vsel %vm1541, 1.0, 0.0
    %v1568 = vsel %vm1542, 1.0, 0.0
    %v1569 = vsel %vm1543, 1.0, 0.0
    %v1570 = vsel %vm1544, 1.0, 0.0
    %v1571 = vsel %vm1545, 1.0, 0.0
    %v1572 = vsel %vm1546, 1.0, 0.0
    %v1573 = vsel %vm1547, 1.0, 0.0
    %v1574 = vsel %vm1548, 1.0, 0.0
    %v1575 = vsel %vm1549, 1.0, 0.0
    %v1576 = vsel %vm1550, 1.0, 0.0
    %v1577 = vsel %vm1551, 1.0, 0.0
    %v1578 = vsel %vm1552, 1.0, 0.0
    %v1579 = vsel %vm1553, 1.0, 0.0
    %v1580 = vsel %vm1554, 1.0, 0.0
    %v1581 = vsel %vm1555, 1.0, 0.0
    %v1582 = vsel %vm1556, 1.0, 0.0
    %v1583 = vsel %vm1557, 1.0, 0.0
    %v1584 = vsel %vm1558, 1.0, 0.0
    %v1585 = vsel %vm1559, 1.0, 0.0
    %v1586 = vsel %vm1560, 1.0, 0.0
    %v1587 = vsel %vm1561, 1.0, 0.0
    %v1588 = vsel %vm1562, 1.0, 0.0
    %s1589 = sld [smem:[#allocation6 + $0x100]]
    %v1590 = vstv %s1589
    %v1591 = vsel %vm190, %v1590, 0.0
    %v1592 = vsel %vm191, %v1590, 0.0
    %v1593 = vsel %vm192, %v1590, 0.0
    %v1594 = vsel %vm193, %v1590, 0.0
    %v1595 = vsel %vm194, %v1590, 0.0
    %v1596 = vsel %vm195, %v1590, 0.0
    %v1597 = vsel %vm196, %v1590, 0.0
    %v1598 = vsel %vm197, %v1590, 0.0
    %v1599 = vsel %vm198, %v1590, 0.0
    %v1600 = vsel %vm199, %v1590, 0.0
    %v1601 = vsel %vm200, %v1590, 0.0
    %v1602 = vsel %vm201, %v1590, 0.0
    %v1603 = vsel %vm202, %v1590, 0.0
    %v1604 = vsel %vm203, %v1590, 0.0
    %v1605 = vsel %vm204, %v1590, 0.0
    %v1606 = vsel %vm205, %v1590, 0.0
    %v1607 = vsel %vm206, %v1590, 0.0
    %v1608 = vsel %vm207, %v1590, 0.0
    %v1609 = vsel %vm208, %v1590, 0.0
    %v1610 = vsel %vm209, %v1590, 0.0
    %v1611 = vsel %vm210, %v1590, 0.0
    %v1612 = vsel %vm211, %v1590, 0.0
    %v1613 = vsel %vm212, %v1590, 0.0
    %v1614 = vsel %vm213, %v1590, 0.0
    %v1615 = vsel %vm214, %v1590, 0.0
    %v1616 = vadd.f32 %v1591, 0.0
    %v1617 = vadd.f32 %v1592, 0.0
    %v1618 = vadd.f32 %v1593, 0.0
    %v1619 = vadd.f32 %v1594, 0.0
    %v1620 = vadd.f32 %v1595, 0.0
    %v1621 = vadd.f32 %v1596, 0.0
    %v1622 = vadd.f32 %v1597, 0.0
    %v1623 = vadd.f32 %v1598, 0.0
    %v1624 = vadd.f32 %v1599, 0.0
    %v1625 = vadd.f32 %v1600, 0.0
    %v1626 = vadd.f32 %v1601, 0.0
    %v1627 = vadd.f32 %v1602, 0.0
    %v1628 = vadd.f32 %v1603, 0.0
    %v1629 = vadd.f32 %v1604, 0.0
    %v1630 = vadd.f32 %v1605, 0.0
    %v1631 = vadd.f32 %v1606, 0.0
    %v1632 = vadd.f32 %v1607, 0.0
    %v1633 = vadd.f32 %v1608, 0.0
    %v1634 = vadd.f32 %v1609, 0.0
    %v1635 = vadd.f32 %v1610, 0.0
    %v1636 = vadd.f32 %v1611, 0.0
    %v1637 = vadd.f32 %v1612, 0.0
    %v1638 = vadd.f32 %v1613, 0.0
    %v1639 = vadd.f32 %v1614, 0.0
    %v1640 = vadd.f32 %v1615, 0.0
    %s1641 = sld [smem:[#allocation6 + $0x101]]
    %v1642 = vstv %s1641
    %v1643 = vsel %vm267, %v1642, 0.0
    %v1644 = vsel %vm268, %v1642, 0.0
    %v1645 = vsel %vm269, %v1642, 0.0
    %v1646 = vsel %vm270, %v1642, 0.0
    %v1647 = vsel %vm271, %v1642, 0.0
    %v1648 = vsel %vm272, %v1642, 0.0
    %v1649 = vsel %vm273, %v1642, 0.0
    %v1650 = vsel %vm274, %v1642, 0.0
    %v1651 = vsel %vm275, %v1642, 0.0
    %v1652 = vsel %vm276, %v1642, 0.0
    %v1653 = vsel %vm277, %v1642, 0.0
    %v1654 = vsel %vm278, %v1642, 0.0
    %v1655 = vsel %vm279, %v1642, 0.0
    %v1656 = vsel %vm280, %v1642, 0.0
    %v1657 = vsel %vm281, %v1642, 0.0
    %v1658 = vsel %vm282, %v1642, 0.0
    %v1659 = vsel %vm283, %v1642, 0.0
    %v1660 = vsel %vm284, %v1642, 0.0
    %v1661 = vsel %vm285, %v1642, 0.0
    %v1662 = vsel %vm286, %v1642, 0.0
    %v1663 = vsel %vm287, %v1642, 0.0
    %v1664 = vsel %vm288, %v1642, 0.0
    %v1665 = vsel %vm289, %v1642, 0.0
    %v1666 = vsel %vm290, %v1642, 0.0
    %v1667 = vsel %vm291, %v1642, 0.0
    %v1668 = vadd.f32 %v1616, %v1643
    %v1669 = vadd.f32 %v1617, %v1644
    %v1670 = vadd.f32 %v1618, %v1645
    %v1671 = vadd.f32 %v1619, %v1646
    %v1672 = vadd.f32 %v1620, %v1647
    %v1673 = vadd.f32 %v1621, %v1648
    %v1674 = vadd.f32 %v1622, %v1649
    %v1675 = vadd.f32 %v1623, %v1650
    %v1676 = vadd.f32 %v1624, %v1651
    %v1677 = vadd.f32 %v1625, %v1652
    %v1678 = vadd.f32 %v1626, %v1653
    %v1679 = vadd.f32 %v1627, %v1654
    %v1680 = vadd.f32 %v1628, %v1655
    %v1681 = vadd.f32 %v1629, %v1656
    %v1682 = vadd.f32 %v1630, %v1657
    %v1683 = vadd.f32 %v1631, %v1658
    %v1684 = vadd.f32 %v1632, %v1659
    %v1685 = vadd.f32 %v1633, %v1660
    %v1686 = vadd.f32 %v1634, %v1661
    %v1687 = vadd.f32 %v1635, %v1662
    %v1688 = vadd.f32 %v1636, %v1663
    %v1689 = vadd.f32 %v1637, %v1664
    %v1690 = vadd.f32 %v1638, %v1665
    %v1691 = vadd.f32 %v1639, %v1666
    %v1692 = vadd.f32 %v1640, %v1667
    %s1693 = sld [smem:[#allocation6 + $0x102]]
    %v1694 = vstv %s1693
    %v1695 = vsel %vm344, %v1694, 0.0
    %v1696 = vsel %vm345, %v1694, 0.0
    %v1697 = vsel %vm346, %v1694, 0.0
    %v1698 = vsel %vm347, %v1694, 0.0
    %v1699 = vsel %vm348, %v1694, 0.0
    %v1700 = vsel %vm349, %v1694, 0.0
    %v1701 = vsel %vm350, %v1694, 0.0
    %v1702 = vsel %vm351, %v1694, 0.0
    %v1703 = vsel %vm352, %v1694, 0.0
    %v1704 = vsel %vm353, %v1694, 0.0
    %v1705 = vsel %vm354, %v1694, 0.0
    %v1706 = vsel %vm355, %v1694, 0.0
    %v1707 = vsel %vm356, %v1694, 0.0
    %v1708 = vsel %vm357, %v1694, 0.0
    %v1709 = vsel %vm358, %v1694, 0.0
    %v1710 = vsel %vm359, %v1694, 0.0
    %v1711 = vsel %vm360, %v1694, 0.0
    %v1712 = vsel %vm361, %v1694, 0.0
    %v1713 = vsel %vm362, %v1694, 0.0
    %v1714 = vsel %vm363, %v1694, 0.0
    %v1715 = vsel %vm364, %v1694, 0.0
    %v1716 = vsel %vm365, %v1694, 0.0
    %v1717 = vsel %vm366, %v1694, 0.0
    %v1718 = vsel %vm367, %v1694, 0.0
    %v1719 = vsel %vm368, %v1694, 0.0
    %v1720 = vadd.f32 %v1668, %v1695
    %v1721 = vadd.f32 %v1669, %v1696
    %v1722 = vadd.f32 %v1670, %v1697
    %v1723 = vadd.f32 %v1671, %v1698
    %v1724 = vadd.f32 %v1672, %v1699
    %v1725 = vadd.f32 %v1673, %v1700
    %v1726 = vadd.f32 %v1674, %v1701
    %v1727 = vadd.f32 %v1675, %v1702
    %v1728 = vadd.f32 %v1676, %v1703
    %v1729 = vadd.f32 %v1677, %v1704
    %v1730 = vadd.f32 %v1678, %v1705
    %v1731 = vadd.f32 %v1679, %v1706
    %v1732 = vadd.f32 %v1680, %v1707
    %v1733 = vadd.f32 %v1681, %v1708
    %v1734 = vadd.f32 %v1682, %v1709
    %v1735 = vadd.f32 %v1683, %v1710
    %v1736 = vadd.f32 %v1684, %v1711
    %v1737 = vadd.f32 %v1685, %v1712
    %v1738 = vadd.f32 %v1686, %v1713
    %v1739 = vadd.f32 %v1687, %v1714
    %v1740 = vadd.f32 %v1688, %v1715
    %v1741 = vadd.f32 %v1689, %v1716
    %v1742 = vadd.f32 %v1690, %v1717
    %v1743 = vadd.f32 %v1691, %v1718
    %v1744 = vadd.f32 %v1692, %v1719
    %s1745 = sld [smem:[#allocation6 + $0x103]]
    %v1746 = vstv %s1745
    %v1747 = vsel %vm421, %v1746, 0.0
    %v1748 = vsel %vm422, %v1746, 0.0
    %v1749 = vsel %vm423, %v1746, 0.0
    %v1750 = vsel %vm424, %v1746, 0.0
    %v1751 = vsel %vm425, %v1746, 0.0
    %v1752 = vsel %vm426, %v1746, 0.0
    %v1753 = vsel %vm427, %v1746, 0.0
    %v1754 = vsel %vm428, %v1746, 0.0
    %v1755 = vsel %vm429, %v1746, 0.0
    %v1756 = vsel %vm430, %v1746, 0.0
    %v1757 = vsel %vm431, %v1746, 0.0
    %v1758 = vsel %vm432, %v1746, 0.0
    %v1759 = vsel %vm433, %v1746, 0.0
    %v1760 = vsel %vm434, %v1746, 0.0
    %v1761 = vsel %vm435, %v1746, 0.0
    %v1762 = vsel %vm436, %v1746, 0.0
    %v1763 = vsel %vm437, %v1746, 0.0
    %v1764 = vsel %vm438, %v1746, 0.0
    %v1765 = vsel %vm439, %v1746, 0.0
    %v1766 = vsel %vm440, %v1746, 0.0
    %v1767 = vsel %vm441, %v1746, 0.0
    %v1768 = vsel %vm442, %v1746, 0.0
    %v1769 = vsel %vm443, %v1746, 0.0
    %v1770 = vsel %vm444, %v1746, 0.0
    %v1771 = vsel %vm445, %v1746, 0.0
    %v1772 = vadd.f32 %v1720, %v1747
    %v1773 = vadd.f32 %v1721, %v1748
    %v1774 = vadd.f32 %v1722, %v1749
    %v1775 = vadd.f32 %v1723, %v1750
    %v1776 = vadd.f32 %v1724, %v1751
    %v1777 = vadd.f32 %v1725, %v1752
    %v1778 = vadd.f32 %v1726, %v1753
    %v1779 = vadd.f32 %v1727, %v1754
    %v1780 = vadd.f32 %v1728, %v1755
    %v1781 = vadd.f32 %v1729, %v1756
    %v1782 = vadd.f32 %v1730, %v1757
    %v1783 = vadd.f32 %v1731, %v1758
    %v1784 = vadd.f32 %v1732, %v1759
    %v1785 = vadd.f32 %v1733, %v1760
    %v1786 = vadd.f32 %v1734, %v1761
    %v1787 = vadd.f32 %v1735, %v1762
    %v1788 = vadd.f32 %v1736, %v1763
    %v1789 = vadd.f32 %v1737, %v1764
    %v1790 = vadd.f32 %v1738, %v1765
    %v1791 = vadd.f32 %v1739, %v1766
    %v1792 = vadd.f32 %v1740, %v1767
    %v1793 = vadd.f32 %v1741, %v1768
    %v1794 = vadd.f32 %v1742, %v1769
    %v1795 = vadd.f32 %v1743, %v1770
    %v1796 = vadd.f32 %v1744, %v1771
    %v1798 = vsel %vm548, %v1564, 0
    %v1801 = vsel %vm548, %v1566, 0
    %v1804 = vsel %vm548, %v1568, 0
    %v1807 = vsel %vm548, %v1570, 0
    %v1810 = vsel %vm548, %v1572, 0
    %v1813 = vsel %vm548, %v1574, 0
    %v1816 = vsel %vm548, %v1576, 0
    %v1819 = vsel %vm548, %v1578, 0
    %v1822 = vsel %vm548, %v1580, 0
    %v1825 = vsel %vm548, %v1582, 0
    %v1828 = vsel %vm548, %v1584, 0
    %v1831 = vsel %vm548, %v1586, 0
    %v1834 = vsel %vm548, %v1588, 0
    %1836 = vmatprep.subr.mxu0 %v499
    %1837 = vmatpush1.msra.mxu0 %v498
    %1838 = vmatprep.subr.mxu0 %v501
    %1839 = vmatpush1.msra.mxu0 %v500
    %1840 = vmatprep.subr.mxu0 %v503
    %1841 = vmatpush1.msra.mxu0 %v502
    %1842 = vmatprep.subr.mxu0 %v505
    %1843 = vmatpush1.msra.mxu0 %v504
    %1844 = vmatprep.subr.mxu0 %v507
    %1845 = vmatpush1.msra.mxu0 %v506
    %1846 = vmatprep.subr.mxu0 %v509
    %1847 = vmatpush1.msra.mxu0 %v508
    %1848 = vmatprep.subr.mxu0 %v511
    %1849 = vmatpush1.msra.mxu0 %v510
    %1850 = vmatprep.subr.mxu0 %v513
    %1851 = vmatpush1.msra.mxu0 %v512
    %1852 = vmatprep.subr.mxu0 %v515
    %1853 = vmatpush1.msra.mxu0 %v514
    %1854 = vmatprep.subr.mxu0 %v517
    %1855 = vmatpush1.msra.mxu0 %v516
    %1856 = vmatprep.subr.mxu0 %v519
    %1857 = vmatpush1.msra.mxu0 %v518
    %1858 = vmatprep.subr.mxu0 %v521
    %1859 = vmatpush1.msra.mxu0 %v520
    %1860 = vmatprep.subr.mxu0 %v523
    %1861 = vmatpush1.msra.mxu0 %v522
    %1862 = vmatprep.subr.mxu0 %v525
    %1863 = vmatpush1.msra.mxu0 %v524
    %1864 = vmatprep.subr.mxu0 %v527
    %1865 = vmatpush1.msra.mxu0 %v526
    %1866 = vmatprep.subr.mxu0 %v529
    %1867 = vmatpush1.msra.mxu0 %v528
    %1868 = vmatprep.subr.mxu0 %v531
    %1869 = vmatpush1.msra.mxu0 %v530
    %1870 = vmatprep.subr.mxu0 %v533
    %1871 = vmatpush1.msra.mxu0 %v532
    %1872 = vmatprep.subr.mxu0 %v535
    %1873 = vmatpush1.msra.mxu0 %v534
    %1874 = vmatprep.subr.mxu0 %v537
    %1875 = vmatpush1.msra.mxu0 %v536
    %1876 = vmatprep.subr.mxu0 %v539
    %1877 = vmatpush1.msra.mxu0 %v538
    %1878 = vmatprep.subr.mxu0 %v541
    %1879 = vmatpush1.msra.mxu0 %v540
    %1880 = vmatprep.subr.mxu0 %v543
    %1881 = vmatpush1.msra.mxu0 %v542
    %1882 = vmatprep.subr.mxu0 %v545
    %1883 = vmatpush1.msra.mxu0 %v544
    %1884 = vmatprep.subr.mxu0 %v547
    %1885 = vmatpush1.msra.mxu0 %v546
    %1886 = vmatprep.subr.mxu0 0.0
    %1887 = vmatpush1.msra.mxu0 0.0
    %1888 = vmatprep.subr.mxu0 0.0
    %1889 = vmatpush1.msra.mxu0 0.0
    %1890 = vmatprep.subr.mxu0 0.0
    %1891 = vmatpush1.msra.mxu0 0.0
    %1892 = vmatprep.subr.mxu0 0.0
    %1893 = vmatpush1.msra.mxu0 0.0
    %1894 = vmatprep.subr.mxu0 0.0
    %1895 = vmatpush1.msra.mxu0 0.0
    %1896 = vmatprep.subr.mxu0 0.0
    %1897 = vmatpush1.msra.mxu0 0.0
    %1898 = vmatprep.subr.mxu0 0.0
    %1899 = vmatpush1.msra.mxu0 0.0
    %1900 = vmatprep.mubr.f32.mxu0 %v1798
    %1901 = vmatmul.mubr.f32.gmra.mrb[0].mxu0 %v1563
    %v1902 = vpop.f32.mrb[0].mxu0
    %v1903 = vadd.f32 0.0, %v1902
    %v1904 = vpop.f32.mrb[0].mxu0
    %v1905 = vadd.f32 0.0, %v1904
    %1906 = vmatprep.mubr.f32.mxu0 %v1801
    %1907 = vmatmul.mubr.f32.gmra.mrb[0].mxu0 %v1565
    %v1908 = vpop.f32.mrb[0].mxu0
    %v1909 = vadd.f32 0.0, %v1908
    %v1910 = vpop.f32.mrb[0].mxu0
    %v1911 = vadd.f32 0.0, %v1910
    %1912 = vmatprep.mubr.f32.mxu0 %v1804
    %1913 = vmatmul.mubr.f32.gmra.mrb[0].mxu0 %v1567
    %v1914 = vpop.f32.mrb[0].mxu0
    %v1915 = vadd.f32 0.0, %v1914
    %v1916 = vpop.f32.mrb[0].mxu0
    %v1917 = vadd.f32 0.0, %v1916
    %1918 = vmatprep.mubr.f32.mxu0 %v1807
    %1919 = vmatmul.mubr.f32.gmra.mrb[0].mxu0 %v1569
    %v1920 = vpop.f32.mrb[0].mxu0
    %v1921 = vadd.f32 0.0, %v1920
    %v1922 = vpop.f32.mrb[0].mxu0
    %v1923 = vadd.f32 0.0, %v1922
    %1924 = vmatprep.mubr.f32.mxu0 %v1810
    %1925 = vmatmul.mubr.f32.gmra.mrb[0].mxu0 %v1571
    %v1926 = vpop.f32.mrb[0].mxu0
    %v1927 = vadd.f32 0.0, %v1926
    %v1928 = vpop.f32.mrb[0].mxu0
    %v1929 = vadd.f32 0.0, %v1928
    %1930 = vmatprep.mubr.f32.mxu0 %v1813
    %1931 = vmatmul.mubr.f32.gmra.mrb[0].mxu0 %v1573
    %v1932 = vpop.f32.mrb[0].mxu0
    %v1933 = vadd.f32 0.0, %v1932
    %v1934 = vpop.f32.mrb[0].mxu0
    %v1935 = vadd.f32 0.0, %v1934
    %1936 = vmatprep.mubr.f32.mxu0 %v1816
    %1937 = vmatmul.mubr.f32.gmra.mrb[0].mxu0 %v1575
    %v1938 = vpop.f32.mrb[0].mxu0
    %v1939 = vadd.f32 0.0, %v1938
    %v1940 = vpop.f32.mrb[0].mxu0
    %v1941 = vadd.f32 0.0, %v1940
    %1942 = vmatprep.mubr.f32.mxu0 %v1819
    %1943 = vmatmul.mubr.f32.gmra.mrb[0].mxu0 %v1577
    %v1944 = vpop.f32.mrb[0].mxu0
    %v1945 = vadd.f32 0.0, %v1944
    %v1946 = vpop.f32.mrb[0].mxu0
    %v1947 = vadd.f32 0.0, %v1946
    %1948 = vmatprep.mubr.f32.mxu0 %v1822
    %1949 = vmatmul.mubr.f32.gmra.mrb[0].mxu0 %v1579
    %v1950 = vpop.f32.mrb[0].mxu0
    %v1951 = vadd.f32 0.0, %v1950
    %v1952 = vpop.f32.mrb[0].mxu0
    %v1953 = vadd.f32 0.0, %v1952
    %1954 = vmatprep.mubr.f32.mxu0 %v1825
    %1955 = vmatmul.mubr.f32.gmra.mrb[0].mxu0 %v1581
    %v1956 = vpop.f32.mrb[0].mxu0
    %v1957 = vadd.f32 0.0, %v1956
    %v1958 = vpop.f32.mrb[0].mxu0
    %v1959 = vadd.f32 0.0, %v1958
    %1960 = vmatprep.mubr.f32.mxu0 %v1828
    %1961 = vmatmul.mubr.f32.gmra.mrb[0].mxu0 %v1583
    %v1962 = vpop.f32.mrb[0].mxu0
    %v1963 = vadd.f32 0.0, %v1962
    %v1964 = vpop.f32.mrb[0].mxu0
    %v1965 = vadd.f32 0.0, %v1964
    %1966 = vmatprep.mubr.f32.mxu0 %v1831
    %1967 = vmatmul.mubr.f32.gmra.mrb[0].mxu0 %v1585
    %v1968 = vpop.f32.mrb[0].mxu0
    %v1969 = vadd.f32 0.0, %v1968
    %v1970 = vpop.f32.mrb[0].mxu0
    %v1971 = vadd.f32 0.0, %v1970
    %1972 = vmatprep.mubr.f32.mxu0 %v1834
    %1973 = vmatmul.mubr.f32.gmra.mrb[0].mxu0 %v1587
    %v1974 = vpop.f32.mrb[0].mxu0
    %v1975 = vadd.f32 0.0, %v1974
    %v1976 = vpop.f32.mrb[0].mxu0
    %v1977 = vadd.f32 0.0, %v1976
    %1978 = vdwg.mxu0
    %v1980 = vsel %vm548, %v1905, 0
    %v1983 = vsel %vm548, %v1911, 0
    %v1986 = vsel %vm548, %v1917, 0
    %v1989 = vsel %vm548, %v1923, 0
    %v1992 = vsel %vm548, %v1929, 0
    %v1995 = vsel %vm548, %v1935, 0
    %v1998 = vsel %vm548, %v1941, 0
    %v2001 = vsel %vm548, %v1947, 0
    %v2004 = vsel %vm548, %v1953, 0
    %v2007 = vsel %vm548, %v1959, 0
    %v2010 = vsel %vm548, %v1965, 0
    %v2013 = vsel %vm548, %v1971, 0
    %v2016 = vsel %vm548, %v1977, 0
    %2018 = vmatprep.subr.mxu0 0.0
    %2019 = vmatpush1.msra.mxu0 %v1772
    %2020 = vmatprep.subr.mxu0 0.0
    %2021 = vmatpush1.msra.mxu0 %v1773
    %2022 = vmatprep.subr.mxu0 0.0
    %2023 = vmatpush1.msra.mxu0 %v1774
    %2024 = vmatprep.subr.mxu0 0.0
    %2025 = vmatpush1.msra.mxu0 %v1775
    %2026 = vmatprep.subr.mxu0 0.0
    %2027 = vmatpush1.msra.mxu0 %v1776
    %2028 = vmatprep.subr.mxu0 0.0
    %2029 = vmatpush1.msra.mxu0 %v1777
    %2030 = vmatprep.subr.mxu0 0.0
    %2031 = vmatpush1.msra.mxu0 %v1778
    %2032 = vmatprep.subr.mxu0 0.0
    %2033 = vmatpush1.msra.mxu0 %v1779
    %2034 = vmatprep.subr.mxu0 0.0
    %2035 = vmatpush1.msra.mxu0 %v1780
    %2036 = vmatprep.subr.mxu0 0.0
    %2037 = vmatpush1.msra.mxu0 %v1781
    %2038 = vmatprep.subr.mxu0 0.0
    %2039 = vmatpush1.msra.mxu0 %v1782
    %2040 = vmatprep.subr.mxu0 0.0
    %2041 = vmatpush1.msra.mxu0 %v1783
    %2042 = vmatprep.subr.mxu0 0.0
    %2043 = vmatpush1.msra.mxu0 %v1784
    %2044 = vmatprep.subr.mxu0 0.0
    %2045 = vmatpush1.msra.mxu0 %v1785
    %2046 = vmatprep.subr.mxu0 0.0
    %2047 = vmatpush1.msra.mxu0 %v1786
    %2048 = vmatprep.subr.mxu0 0.0
    %2049 = vmatpush1.msra.mxu0 %v1787
    %2050 = vmatprep.subr.mxu0 0.0
    %2051 = vmatpush1.msra.mxu0 %v1788
    %2052 = vmatprep.subr.mxu0 0.0
    %2053 = vmatpush1.msra.mxu0 %v1789
    %2054 = vmatprep.subr.mxu0 0.0
    %2055 = vmatpush1.msra.mxu0 %v1790
    %2056 = vmatprep.subr.mxu0 0.0
    %2057 = vmatpush1.msra.mxu0 %v1791
    %2058 = vmatprep.subr.mxu0 0.0
    %2059 = vmatpush1.msra.mxu0 %v1792
    %2060 = vmatprep.subr.mxu0 0.0
    %2061 = vmatpush1.msra.mxu0 %v1793
    %2062 = vmatprep.subr.mxu0 0.0
    %2063 = vmatpush1.msra.mxu0 %v1794
    %2064 = vmatprep.subr.mxu0 0.0
    %2065 = vmatpush1.msra.mxu0 %v1795
    %2066 = vmatprep.subr.mxu0 0.0
    %2067 = vmatpush1.msra.mxu0 %v1796
    %2068 = vmatprep.subr.mxu0 0.0
    %2069 = vmatpush1.msra.mxu0 0.0
    %2070 = vmatprep.subr.mxu0 0.0
    %2071 = vmatpush1.msra.mxu0 0.0
    %2072 = vmatprep.subr.mxu0 0.0
    %2073 = vmatpush1.msra.mxu0 0.0
    %2074 = vmatprep.subr.mxu0 0.0
    %2075 = vmatpush1.msra.mxu0 0.0
    %2076 = vmatprep.subr.mxu0 0.0
    %2077 = vmatpush1.msra.mxu0 0.0
    %2078 = vmatprep.subr.mxu0 0.0
    %2079 = vmatpush1.msra.mxu0 0.0
    %2080 = vmatprep.subr.mxu0 0.0
    %2081 = vmatpush1.msra.mxu0 0.0
    %2082 = vmatprep.mubr.f32.mxu0 %v1980
    %2083 = vmatmul.mubr.f32.gmra.mrb[0].mxu0 %v1903
    %v2084 = vpop.f32.mrb[0].mxu0
    %v2085 = vadd.f32 0.0, %v2084
    %v2086 = vpop.f32.mrb[0].mxu0
    %2087 = vmatprep.mubr.f32.mxu0 %v1983
    %2088 = vmatmul.mubr.f32.gmra.mrb[0].mxu0 %v1909
    %v2089 = vpop.f32.mrb[0].mxu0
    %v2090 = vadd.f32 0.0, %v2089
    %v2091 = vpop.f32.mrb[0].mxu0
    %2092 = vmatprep.mubr.f32.mxu0 %v1986
    %2093 = vmatmul.mubr.f32.gmra.mrb[0].mxu0 %v1915
    %v2094 = vpop.f32.mrb[0].mxu0
    %v2095 = vadd.f32 0.0, %v2094
    %v2096 = vpop.f32.mrb[0].mxu0
    %2097 = vmatprep.mubr.f32.mxu0 %v1989
    %2098 = vmatmul.mubr.f32.gmra.mrb[0].mxu0 %v1921
    %v2099 = vpop.f32.mrb[0].mxu0
    %v2100 = vadd.f32 0.0, %v2099
    %v2101 = vpop.f32.mrb[0].mxu0
    %2102 = vmatprep.mubr.f32.mxu0 %v1992
    %2103 = vmatmul.mubr.f32.gmra.mrb[0].mxu0 %v1927
    %v2104 = vpop.f32.mrb[0].mxu0
    %v2105 = vadd.f32 0.0, %v2104
    %v2106 = vpop.f32.mrb[0].mxu0
    %2107 = vmatprep.mubr.f32.mxu0 %v1995
    %2108 = vmatmul.mubr.f32.gmra.mrb[0].mxu0 %v1933
    %v2109 = vpop.f32.mrb[0].mxu0
    %v2110 = vadd.f32 0.0, %v2109
    %v2111 = vpop.f32.mrb[0].mxu0
    %2112 = vmatprep.mubr.f32.mxu0 %v1998
    %2113 = vmatmul.mubr.f32.gmra.mrb[0].mxu0 %v1939
    %v2114 = vpop.f32.mrb[0].mxu0
    %v2115 = vadd.f32 0.0, %v2114
    %v2116 = vpop.f32.mrb[0].mxu0
    %2117 = vmatprep.mubr.f32.mxu0 %v2001
    %2118 = vmatmul.mubr.f32.gmra.mrb[0].mxu0 %v1945
    %v2119 = vpop.f32.mrb[0].mxu0
    %v2120 = vadd.f32 0.0, %v2119
    %v2121 = vpop.f32.mrb[0].mxu0
    %2122 = vmatprep.mubr.f32.mxu0 %v2004
    %2123 = vmatmul.mubr.f32.gmra.mrb[0].mxu0 %v1951
    %v2124 = vpop.f32.mrb[0].mxu0
    %v2125 = vadd.f32 0.0, %v2124
    %v2126 = vpop.f32.mrb[0].mxu0
    %2127 = vmatprep.mubr.f32.mxu0 %v2007
    %2128 = vmatmul.mubr.f32.gmra.mrb[0].mxu0 %v1957
    %v2129 = vpop.f32.mrb[0].mxu0
    %v2130 = vadd.f32 0.0, %v2129
    %v2131 = vpop.f32.mrb[0].mxu0
    %2132 = vmatprep.mubr.f32.mxu0 %v2010
    %2133 = vmatmul.mubr.f32.gmra.mrb[0].mxu0 %v1963
    %v2134 = vpop.f32.mrb[0].mxu0
    %v2135 = vadd.f32 0.0, %v2134
    %v2136 = vpop.f32.mrb[0].mxu0
    %2137 = vmatprep.mubr.f32.mxu0 %v2013
    %2138 = vmatmul.mubr.f32.gmra.mrb[0].mxu0 %v1969
    %v2139 = vpop.f32.mrb[0].mxu0
    %v2140 = vadd.f32 0.0, %v2139
    %v2141 = vpop.f32.mrb[0].mxu0
    %2142 = vmatprep.mubr.f32.mxu0 %v2016
    %2143 = vmatmul.mubr.f32.gmra.mrb[0].mxu0 %v1975
    %v2144 = vpop.f32.mrb[0].mxu0
    %v2145 = vadd.f32 0.0, %v2144
    %v2146 = vpop.f32.mrb[0].mxu0
    %2147 = vdwg.mxu0
    %v2148 = vadd.f32 %v1524, %v2085
    %v2149 = vadd.f32 %v1525, %v2090
    %v2150 = vadd.f32 %v1526, %v2095
    %v2151 = vadd.f32 %v1527, %v2100
    %v2152 = vadd.f32 %v1528, %v2105
    %v2153 = vadd.f32 %v1529, %v2110
    %v2154 = vadd.f32 %v1530, %v2115
    %v2155 = vadd.f32 %v1531, %v2120
    %v2156 = vadd.f32 %v1532, %v2125
    %v2157 = vadd.f32 %v1533, %v2130
    %v2158 = vadd.f32 %v1534, %v2135
    %v2159 = vadd.f32 %v1535, %v2140
    %v2160 = vadd.f32 %v1536, %v2145
    %vm2161 = vcmp.eq.s32.totalorder %v72, 2
    %vm2162 = vcmp.eq.s32.totalorder %v73, 2
    %vm2163 = vcmp.eq.s32.totalorder %v74, 2
    %vm2164 = vcmp.eq.s32.totalorder %v75, 2
    %vm2165 = vcmp.eq.s32.totalorder %v76, 2
    %vm2166 = vcmp.eq.s32.totalorder %v77, 2
    %vm2167 = vcmp.eq.s32.totalorder %v78, 2
    %vm2168 = vcmp.eq.s32.totalorder %v79, 2
    %vm2169 = vcmp.eq.s32.totalorder %v80, 2
    %vm2170 = vcmp.eq.s32.totalorder %v81, 2
    %vm2171 = vcmp.eq.s32.totalorder %v82, 2
    %vm2172 = vcmp.eq.s32.totalorder %v83, 2
    %vm2173 = vcmp.eq.s32.totalorder %v84, 2
    %vm2174 = vcmp.eq.s32.totalorder %v85, 2
    %vm2175 = vcmp.eq.s32.totalorder %v86, 2
    %vm2176 = vcmp.eq.s32.totalorder %v87, 2
    %vm2177 = vcmp.eq.s32.totalorder %v88, 2
    %vm2178 = vcmp.eq.s32.totalorder %v89, 2
    %vm2179 = vcmp.eq.s32.totalorder %v90, 2
    %vm2180 = vcmp.eq.s32.totalorder %v91, 2
    %vm2181 = vcmp.eq.s32.totalorder %v92, 2
    %vm2182 = vcmp.eq.s32.totalorder %v93, 2
    %vm2183 = vcmp.eq.s32.totalorder %v94, 2
    %vm2184 = vcmp.eq.s32.totalorder %v95, 2
    %vm2185 = vcmp.eq.s32.totalorder %v96, 2
    %vm2186 = vcmp.eq.s32.totalorder %v97, 2
    %v2187 = vsel %vm2161, 1.0, 0.0
    %v2188 = vsel %vm2162, 1.0, 0.0
    %v2189 = vsel %vm2163, 1.0, 0.0
    %v2190 = vsel %vm2164, 1.0, 0.0
    %v2191 = vsel %vm2165, 1.0, 0.0
    %v2192 = vsel %vm2166, 1.0, 0.0
    %v2193 = vsel %vm2167, 1.0, 0.0
    %v2194 = vsel %vm2168, 1.0, 0.0
    %v2195 = vsel %vm2169, 1.0, 0.0
    %v2196 = vsel %vm2170, 1.0, 0.0
    %v2197 = vsel %vm2171, 1.0, 0.0
    %v2198 = vsel %vm2172, 1.0, 0.0
    %v2199 = vsel %vm2173, 1.0, 0.0
    %v2200 = vsel %vm2174, 1.0, 0.0
    %v2201 = vsel %vm2175, 1.0, 0.0
    %v2202 = vsel %vm2176, 1.0, 0.0
    %v2203 = vsel %vm2177, 1.0, 0.0
    %v2204 = vsel %vm2178, 1.0, 0.0
    %v2205 = vsel %vm2179, 1.0, 0.0
    %v2206 = vsel %vm2180, 1.0, 0.0
    %v2207 = vsel %vm2181, 1.0, 0.0
    %v2208 = vsel %vm2182, 1.0, 0.0
    %v2209 = vsel %vm2183, 1.0, 0.0
    %v2210 = vsel %vm2184, 1.0, 0.0
    %v2211 = vsel %vm2185, 1.0, 0.0
    %v2212 = vsel %vm2186, 1.0, 0.0
    %s2213 = sld [smem:[#allocation6 + $0x180]]
    %v2214 = vstv %s2213
    %v2215 = vsel %vm190, %v2214, 0.0
    %v2216 = vsel %vm191, %v2214, 0.0
    %v2217 = vsel %vm192, %v2214, 0.0
    %v2218 = vsel %vm193, %v2214, 0.0
    %v2219 = vsel %vm194, %v2214, 0.0
    %v2220 = vsel %vm195, %v2214, 0.0
    %v2221 = vsel %vm196, %v2214, 0.0
    %v2222 = vsel %vm197, %v2214, 0.0
    %v2223 = vsel %vm198, %v2214, 0.0
    %v2224 = vsel %vm199, %v2214, 0.0
    %v2225 = vsel %vm200, %v2214, 0.0
    %v2226 = vsel %vm201, %v2214, 0.0
    %v2227 = vsel %vm202, %v2214, 0.0
    %v2228 = vsel %vm203, %v2214, 0.0
    %v2229 = vsel %vm204, %v2214, 0.0
    %v2230 = vsel %vm205, %v2214, 0.0
    %v2231 = vsel %vm206, %v2214, 0.0
    %v2232 = vsel %vm207, %v2214, 0.0
    %v2233 = vsel %vm208, %v2214, 0.0
    %v2234 = vsel %vm209, %v2214, 0.0
    %v2235 = vsel %vm210, %v2214, 0.0
    %v2236 = vsel %vm211, %v2214, 0.0
    %v2237 = vsel %vm212, %v2214, 0.0
    %v2238 = vsel %vm213, %v2214, 0.0
    %v2239 = vsel %vm214, %v2214, 0.0
    %v2240 = vadd.f32 %v2215, 0.0
    %v2241 = vadd.f32 %v2216, 0.0
    %v2242 = vadd.f32 %v2217, 0.0
    %v2243 = vadd.f32 %v2218, 0.0
    %v2244 = vadd.f32 %v2219, 0.0
    %v2245 = vadd.f32 %v2220, 0.0
    %v2246 = vadd.f32 %v2221, 0.0
    %v2247 = vadd.f32 %v2222, 0.0
    %v2248 = vadd.f32 %v2223, 0.0
    %v2249 = vadd.f32 %v2224, 0.0
    %v2250 = vadd.f32 %v2225, 0.0
    %v2251 = vadd.f32 %v2226, 0.0
    %v2252 = vadd.f32 %v2227, 0.0
    %v2253 = vadd.f32 %v2228, 0.0
    %v2254 = vadd.f32 %v2229, 0.0
    %v2255 = vadd.f32 %v2230, 0.0
    %v2256 = vadd.f32 %v2231, 0.0
    %v2257 = vadd.f32 %v2232, 0.0
    %v2258 = vadd.f32 %v2233, 0.0
    %v2259 = vadd.f32 %v2234, 0.0
    %v2260 = vadd.f32 %v2235, 0.0
    %v2261 = vadd.f32 %v2236, 0.0
    %v2262 = vadd.f32 %v2237, 0.0
    %v2263 = vadd.f32 %v2238, 0.0
    %v2264 = vadd.f32 %v2239, 0.0
    %s2265 = sld [smem:[#allocation6 + $0x181]]
    %v2266 = vstv %s2265
    %v2267 = vsel %vm267, %v2266, 0.0
    %v2268 = vsel %vm268, %v2266, 0.0
    %v2269 = vsel %vm269, %v2266, 0.0
    %v2270 = vsel %vm270, %v2266, 0.0
    %v2271 = vsel %vm271, %v2266, 0.0
    %v2272 = vsel %vm272, %v2266, 0.0
    %v2273 = vsel %vm273, %v2266, 0.0
    %v2274 = vsel %vm274, %v2266, 0.0
    %v2275 = vsel %vm275, %v2266, 0.0
    %v2276 = vsel %vm276, %v2266, 0.0
    %v2277 = vsel %vm277, %v2266, 0.0
    %v2278 = vsel %vm278, %v2266, 0.0
    %v2279 = vsel %vm279, %v2266, 0.0
    %v2280 = vsel %vm280, %v2266, 0.0
    %v2281 = vsel %vm281, %v2266, 0.0
    %v2282 = vsel %vm282, %v2266, 0.0
    %v2283 = vsel %vm283, %v2266, 0.0
    %v2284 = vsel %vm284, %v2266, 0.0
    %v2285 = vsel %vm285, %v2266, 0.0
    %v2286 = vsel %vm286, %v2266, 0.0
    %v2287 = vsel %vm287, %v2266, 0.0
    %v2288 = vsel %vm288, %v2266, 0.0
    %v2289 = vsel %vm289, %v2266, 0.0
    %v2290 = vsel %vm290, %v2266, 0.0
    %v2291 = vsel %vm291, %v2266, 0.0
    %v2292 = vadd.f32 %v2240, %v2267
    %v2293 = vadd.f32 %v2241, %v2268
    %v2294 = vadd.f32 %v2242, %v2269
    %v2295 = vadd.f32 %v2243, %v2270
    %v2296 = vadd.f32 %v2244, %v2271
    %v2297 = vadd.f32 %v2245, %v2272
    %v2298 = vadd.f32 %v2246, %v2273
    %v2299 = vadd.f32 %v2247, %v2274
    %v2300 = vadd.f32 %v2248, %v2275
    %v2301 = vadd.f32 %v2249, %v2276
    %v2302 = vadd.f32 %v2250, %v2277
    %v2303 = vadd.f32 %v2251, %v2278
    %v2304 = vadd.f32 %v2252, %v2279
    %v2305 = vadd.f32 %v2253, %v2280
    %v2306 = vadd.f32 %v2254, %v2281
    %v2307 = vadd.f32 %v2255, %v2282
    %v2308 = vadd.f32 %v2256, %v2283
    %v2309 = vadd.f32 %v2257, %v2284
    %v2310 = vadd.f32 %v2258, %v2285
    %v2311 = vadd.f32 %v2259, %v2286
    %v2312 = vadd.f32 %v2260, %v2287
    %v2313 = vadd.f32 %v2261, %v2288
    %v2314 = vadd.f32 %v2262, %v2289
    %v2315 = vadd.f32 %v2263, %v2290
    %v2316 = vadd.f32 %v2264, %v2291
    %s2317 = sld [smem:[#allocation6 + $0x182]]
    %v2318 = vstv %s2317
    %v2319 = vsel %vm344, %v2318, 0.0
    %v2320 = vsel %vm345, %v2318, 0.0
    %v2321 = vsel %vm346, %v2318, 0.0
    %v2322 = vsel %vm347, %v2318, 0.0
    %v2323 = vsel %vm348, %v2318, 0.0
    %v2324 = vsel %vm349, %v2318, 0.0
    %v2325 = vsel %vm350, %v2318, 0.0
    %v2326 = vsel %vm351, %v2318, 0.0
    %v2327 = vsel %vm352, %v2318, 0.0
    %v2328 = vsel %vm353, %v2318, 0.0
    %v2329 = vsel %vm354, %v2318, 0.0
    %v2330 = vsel %vm355, %v2318, 0.0
    %v2331 = vsel %vm356, %v2318, 0.0
    %v2332 = vsel %vm357, %v2318, 0.0
    %v2333 = vsel %vm358, %v2318, 0.0
    %v2334 = vsel %vm359, %v2318, 0.0
    %v2335 = vsel %vm360, %v2318, 0.0
    %v2336 = vsel %vm361, %v2318, 0.0
    %v2337 = vsel %vm362, %v2318, 0.0
    %v2338 = vsel %vm363, %v2318, 0.0
    %v2339 = vsel %vm364, %v2318, 0.0
    %v2340 = vsel %vm365, %v2318, 0.0
    %v2341 = vsel %vm366, %v2318, 0.0
    %v2342 = vsel %vm367, %v2318, 0.0
    %v2343 = vsel %vm368, %v2318, 0.0
    %v2344 = vadd.f32 %v2292, %v2319
    %v2345 = vadd.f32 %v2293, %v2320
    %v2346 = vadd.f32 %v2294, %v2321
    %v2347 = vadd.f32 %v2295, %v2322
    %v2348 = vadd.f32 %v2296, %v2323
    %v2349 = vadd.f32 %v2297, %v2324
    %v2350 = vadd.f32 %v2298, %v2325
    %v2351 = vadd.f32 %v2299, %v2326
    %v2352 = vadd.f32 %v2300, %v2327
    %v2353 = vadd.f32 %v2301, %v2328
    %v2354 = vadd.f32 %v2302, %v2329
    %v2355 = vadd.f32 %v2303, %v2330
    %v2356 = vadd.f32 %v2304, %v2331
    %v2357 = vadd.f32 %v2305, %v2332
    %v2358 = vadd.f32 %v2306, %v2333
    %v2359 = vadd.f32 %v2307, %v2334
    %v2360 = vadd.f32 %v2308, %v2335
    %v2361 = vadd.f32 %v2309, %v2336
    %v2362 = vadd.f32 %v2310, %v2337
    %v2363 = vadd.f32 %v2311, %v2338
    %v2364 = vadd.f32 %v2312, %v2339
    %v2365 = vadd.f32 %v2313, %v2340
    %v2366 = vadd.f32 %v2314, %v2341
    %v2367 = vadd.f32 %v2315, %v2342
    %v2368 = vadd.f32 %v2316, %v2343
    %s2369 = sld [smem:[#allocation6 + $0x183]]
    %v2370 = vstv %s2369
    %v2371 = vsel %vm421, %v2370, 0.0
    %v2372 = vsel %vm422, %v2370, 0.0
    %v2373 = vsel %vm423, %v2370, 0.0
    %v2374 = vsel %vm424, %v2370, 0.0
    %v2375 = vsel %vm425, %v2370, 0.0
    %v2376 = vsel %vm426, %v2370, 0.0
    %v2377 = vsel %vm427, %v2370, 0.0
    %v2378 = vsel %vm428, %v2370, 0.0
    %v2379 = vsel %vm429, %v2370, 0.0
    %v2380 = vsel %vm430, %v2370, 0.0
    %v2381 = vsel %vm431, %v2370, 0.0
    %v2382 = vsel %vm432, %v2370, 0.0
    %v2383 = vsel %vm433, %v2370, 0.0
    %v2384 = vsel %vm434, %v2370, 0.0
    %v2385 = vsel %vm435, %v2370, 0.0
    %v2386 = vsel %vm436, %v2370, 0.0
    %v2387 = vsel %vm437, %v2370, 0.0
    %v2388 = vsel %vm438, %v2370, 0.0
    %v2389 = vsel %vm439, %v2370, 0.0
    %v2390 = vsel %vm440, %v2370, 0.0
    %v2391 = vsel %vm441, %v2370, 0.0
    %v2392 = vsel %vm442, %v2370, 0.0
    %v2393 = vsel %vm443, %v2370, 0.0
    %v2394 = vsel %vm444, %v2370, 0.0
    %v2395 = vsel %vm445, %v2370, 0.0
    %v2396 = vadd.f32 %v2344, %v2371
    %v2397 = vadd.f32 %v2345, %v2372
    %v2398 = vadd.f32 %v2346, %v2373
    %v2399 = vadd.f32 %v2347, %v2374
    %v2400 = vadd.f32 %v2348, %v2375
    %v2401 = vadd.f32 %v2349, %v2376
    %v2402 = vadd.f32 %v2350, %v2377
    %v2403 = vadd.f32 %v2351, %v2378
    %v2404 = vadd.f32 %v2352, %v2379
    %v2405 = vadd.f32 %v2353, %v2380
    %v2406 = vadd.f32 %v2354, %v2381
    %v2407 = vadd.f32 %v2355, %v2382
    %v2408 = vadd.f32 %v2356, %v2383
    %v2409 = vadd.f32 %v2357, %v2384
    %v2410 = vadd.f32 %v2358, %v2385
    %v2411 = vadd.f32 %v2359, %v2386
    %v2412 = vadd.f32 %v2360, %v2387
    %v2413 = vadd.f32 %v2361, %v2388
    %v2414 = vadd.f32 %v2362, %v2389
    %v2415 = vadd.f32 %v2363, %v2390
    %v2416 = vadd.f32 %v2364, %v2391
    %v2417 = vadd.f32 %v2365, %v2392
    %v2418 = vadd.f32 %v2366, %v2393
    %v2419 = vadd.f32 %v2367, %v2394
    %v2420 = vadd.f32 %v2368, %v2395
    %v2422 = vsel %vm548, %v2188, 0
    %v2425 = vsel %vm548, %v2190, 0
    %v2428 = vsel %vm548, %v2192, 0
    %v2431 = vsel %vm548, %v2194, 0
    %v2434 = vsel %vm548, %v2196, 0
    %v2437 = vsel %vm548, %v2198, 0
    %v2440 = vsel %vm548, %v2200, 0
    %v2443 = vsel %vm548, %v2202, 0
    %v2446 = vsel %vm548, %v2204, 0
    %v2449 = vsel %vm548, %v2206, 0
    %v2452 = vsel %vm548, %v2208, 0
    %v2455 = vsel %vm548, %v2210, 0
    %v2458 = vsel %vm548, %v2212, 0
    %2460 = vmatprep.subr.mxu0 %v499
    %2461 = vmatpush1.msra.mxu0 %v498
    %2462 = vmatprep.subr.mxu0 %v501
    %2463 = vmatpush1.msra.mxu0 %v500
    %2464 = vmatprep.subr.mxu0 %v503
    %2465 = vmatpush1.msra.mxu0 %v502
    %2466 = vmatprep.subr.mxu0 %v505
    %2467 = vmatpush1.msra.mxu0 %v504
    %2468 = vmatprep.subr.mxu0 %v507
    %2469 = vmatpush1.msra.mxu0 %v506
    %2470 = vmatprep.subr.mxu0 %v509
    %2471 = vmatpush1.msra.mxu0 %v508
    %2472 = vmatprep.subr.mxu0 %v511
    %2473 = vmatpush1.msra.mxu0 %v510
    %2474 = vmatprep.subr.mxu0 %v513
    %2475 = vmatpush1.msra.mxu0 %v512
    %2476 = vmatprep.subr.mxu0 %v515
    %2477 = vmatpush1.msra.mxu0 %v514
    %2478 = vmatprep.subr.mxu0 %v517
    %2479 = vmatpush1.msra.mxu0 %v516
    %2480 = vmatprep.subr.mxu0 %v519
    %2481 = vmatpush1.msra.mxu0 %v518
    %2482 = vmatprep.subr.mxu0 %v521
    %2483 = vmatpush1.msra.mxu0 %v520
    %2484 = vmatprep.subr.mxu0 %v523
    %2485 = vmatpush1.msra.mxu0 %v522
    %2486 = vmatprep.subr.mxu0 %v525
    %2487 = vmatpush1.msra.mxu0 %v524
    %2488 = vmatprep.subr.mxu0 %v527
    %2489 = vmatpush1.msra.mxu0 %v526
    %2490 = vmatprep.subr.mxu0 %v529
    %2491 = vmatpush1.msra.mxu0 %v528
    %2492 = vmatprep.subr.mxu0 %v531
    %2493 = vmatpush1.msra.mxu0 %v530
    %2494 = vmatprep.subr.mxu0 %v533
    %2495 = vmatpush1.msra.mxu0 %v532
    %2496 = vmatprep.subr.mxu0 %v535
    %2497 = vmatpush1.msra.mxu0 %v534
    %2498 = vmatprep.subr.mxu0 %v537
    %2499 = vmatpush1.msra.mxu0 %v536
    %2500 = vmatprep.subr.mxu0 %v539
    %2501 = vmatpush1.msra.mxu0 %v538
    %2502 = vmatprep.subr.mxu0 %v541
    %2503 = vmatpush1.msra.mxu0 %v540
    %2504 = vmatprep.subr.mxu0 %v543
    %2505 = vmatpush1.msra.mxu0 %v542
    %2506 = vmatprep.subr.mxu0 %v545
    %2507 = vmatpush1.msra.mxu0 %v544
    %2508 = vmatprep.subr.mxu0 %v547
    %2509 = vmatpush1.msra.mxu0 %v546
    %2510 = vmatprep.subr.mxu0 0.0
    %2511 = vmatpush1.msra.mxu0 0.0
    %2512 = vmatprep.subr.mxu0 0.0
    %2513 = vmatpush1.msra.mxu0 0.0
    %2514 = vmatprep.subr.mxu0 0.0
    %2515 = vmatpush1.msra.mxu0 0.0
    %2516 = vmatprep.subr.mxu0 0.0
    %2517 = vmatpush1.msra.mxu0 0.0
    %2518 = vmatprep.subr.mxu0 0.0
    %2519 = vmatpush1.msra.mxu0 0.0
    %2520 = vmatprep.subr.mxu0 0.0
    %2521 = vmatpush1.msra.mxu0 0.0
    %2522 = vmatprep.subr.mxu0 0.0
    %2523 = vmatpush1.msra.mxu0 0.0
    %2524 = vmatprep.mubr.f32.mxu0 %v2422
    %2525 = vmatmul.mubr.f32.gmra.mrb[0].mxu0 %v2187
    %v2526 = vpop.f32.mrb[0].mxu0
    %v2527 = vadd.f32 0.0, %v2526
    %v2528 = vpop.f32.mrb[0].mxu0
    %v2529 = vadd.f32 0.0, %v2528
    %2530 = vmatprep.mubr.f32.mxu0 %v2425
    %2531 = vmatmul.mubr.f32.gmra.mrb[0].mxu0 %v2189
    %v2532 = vpop.f32.mrb[0].mxu0
    %v2533 = vadd.f32 0.0, %v2532
    %v2534 = vpop.f32.mrb[0].mxu0
    %v2535 = vadd.f32 0.0, %v2534
    %2536 = vmatprep.mubr.f32.mxu0 %v2428
    %2537 = vmatmul.mubr.f32.gmra.mrb[0].mxu0 %v2191
    %v2538 = vpop.f32.mrb[0].mxu0
    %v2539 = vadd.f32 0.0, %v2538
    %v2540 = vpop.f32.mrb[0].mxu0
    %v2541 = vadd.f32 0.0, %v2540
    %2542 = vmatprep.mubr.f32.mxu0 %v2431
    %2543 = vmatmul.mubr.f32.gmra.mrb[0].mxu0 %v2193
    %v2544 = vpop.f32.mrb[0].mxu0
    %v2545 = vadd.f32 0.0, %v2544
    %v2546 = vpop.f32.mrb[0].mxu0
    %v2547 = vadd.f32 0.0, %v2546
    %2548 = vmatprep.mubr.f32.mxu0 %v2434
    %2549 = vmatmul.mubr.f32.gmra.mrb[0].mxu0 %v2195
    %v2550 = vpop.f32.mrb[0].mxu0
    %v2551 = vadd.f32 0.0, %v2550
    %v2552 = vpop.f32.mrb[0].mxu0
    %v2553 = vadd.f32 0.0, %v2552
    %2554 = vmatprep.mubr.f32.mxu0 %v2437
    %2555 = vmatmul.mubr.f32.gmra.mrb[0].mxu0 %v2197
    %v2556 = vpop.f32.mrb[0].mxu0
    %v2557 = vadd.f32 0.0, %v2556
    %v2558 = vpop.f32.mrb[0].mxu0
    %v2559 = vadd.f32 0.0, %v2558
    %2560 = vmatprep.mubr.f32.mxu0 %v2440
    %2561 = vmatmul.mubr.f32.gmra.mrb[0].mxu0 %v2199
    %v2562 = vpop.f32.mrb[0].mxu0
    %v2563 = vadd.f32 0.0, %v2562
    %v2564 = vpop.f32.mrb[0].mxu0
    %v2565 = vadd.f32 0.0, %v2564
    %2566 = vmatprep.mubr.f32.mxu0 %v2443
    %2567 = vmatmul.mubr.f32.gmra.mrb[0].mxu0 %v2201
    %v2568 = vpop.f32.mrb[0].mxu0
    %v2569 = vadd.f32 0.0, %v2568
    %v2570 = vpop.f32.mrb[0].mxu0
    %v2571 = vadd.f32 0.0, %v2570
    %2572 = vmatprep.mubr.f32.mxu0 %v2446
    %2573 = vmatmul.mubr.f32.gmra.mrb[0].mxu0 %v2203
    %v2574 = vpop.f32.mrb[0].mxu0
    %v2575 = vadd.f32 0.0, %v2574
    %v2576 = vpop.f32.mrb[0].mxu0
    %v2577 = vadd.f32 0.0, %v2576
    %2578 = vmatprep.mubr.f32.mxu0 %v2449
    %2579 = vmatmul.mubr.f32.gmra.mrb[0].mxu0 %v2205
    %v2580 = vpop.f32.mrb[0].mxu0
    %v2581 = vadd.f32 0.0, %v2580
    %v2582 = vpop.f32.mrb[0].mxu0
    %v2583 = vadd.f32 0.0, %v2582
    %2584 = vmatprep.mubr.f32.mxu0 %v2452
    %2585 = vmatmul.mubr.f32.gmra.mrb[0].mxu0 %v2207
    %v2586 = vpop.f32.mrb[0].mxu0
    %v2587 = vadd.f32 0.0, %v2586
    %v2588 = vpop.f32.mrb[0].mxu0
    %v2589 = vadd.f32 0.0, %v2588
    %2590 = vmatprep.mubr.f32.mxu0 %v2455
    %2591 = vmatmul.mubr.f32.gmra.mrb[0].mxu0 %v2209
    %v2592 = vpop.f32.mrb[0].mxu0
    %v2593 = vadd.f32 0.0, %v2592
    %v2594 = vpop.f32.mrb[0].mxu0
    %v2595 = vadd.f32 0.0, %v2594
    %2596 = vmatprep.mubr.f32.mxu0 %v2458
    %2597 = vmatmul.mubr.f32.gmra.mrb[0].mxu0 %v2211
    %v2598 = vpop.f32.mrb[0].mxu0
    %v2599 = vadd.f32 0.0, %v2598
    %v2600 = vpop.f32.mrb[0].mxu0
    %v2601 = vadd.f32 0.0, %v2600
    %2602 = vdwg.mxu0
    %v2604 = vsel %vm548, %v2529, 0
    %v2607 = vsel %vm548, %v2535, 0
    %v2610 = vsel %vm548, %v2541, 0
    %v2613 = vsel %vm548, %v2547, 0
    %v2616 = vsel %vm548, %v2553, 0
    %v2619 = vsel %vm548, %v2559, 0
    %v2622 = vsel %vm548, %v2565, 0
    %v2625 = vsel %vm548, %v2571, 0
    %v2628 = vsel %vm548, %v2577, 0
    %v2631 = vsel %vm548, %v2583, 0
    %v2634 = vsel %vm548, %v2589, 0
    %v2637 = vsel %vm548, %v2595, 0
    %v2640 = vsel %vm548, %v2601, 0
    %2642 = vmatprep.subr.mxu0 0.0
    %2643 = vmatpush1.msra.mxu0 %v2396
    %2644 = vmatprep.subr.mxu0 0.0
    %2645 = vmatpush1.msra.mxu0 %v2397
    %2646 = vmatprep.subr.mxu0 0.0
    %2647 = vmatpush1.msra.mxu0 %v2398
    %2648 = vmatprep.subr.mxu0 0.0
    %2649 = vmatpush1.msra.mxu0 %v2399
    %2650 = vmatprep.subr.mxu0 0.0
    %2651 = vmatpush1.msra.mxu0 %v2400
    %2652 = vmatprep.subr.mxu0 0.0
    %2653 = vmatpush1.msra.mxu0 %v2401
    %2654 = vmatprep.subr.mxu0 0.0
    %2655 = vmatpush1.msra.mxu0 %v2402
    %2656 = vmatprep.subr.mxu0 0.0
    %2657 = vmatpush1.msra.mxu0 %v2403
    %2658 = vmatprep.subr.mxu0 0.0
    %2659 = vmatpush1.msra.mxu0 %v2404
    %2660 = vmatprep.subr.mxu0 0.0
    %2661 = vmatpush1.msra.mxu0 %v2405
    %2662 = vmatprep.subr.mxu0 0.0
    %2663 = vmatpush1.msra.mxu0 %v2406
    %2664 = vmatprep.subr.mxu0 0.0
    %2665 = vmatpush1.msra.mxu0 %v2407
    %2666 = vmatprep.subr.mxu0 0.0
    %2667 = vmatpush1.msra.mxu0 %v2408
    %2668 = vmatprep.subr.mxu0 0.0
    %2669 = vmatpush1.msra.mxu0 %v2409
    %2670 = vmatprep.subr.mxu0 0.0
    %2671 = vmatpush1.msra.mxu0 %v2410
    %2672 = vmatprep.subr.mxu0 0.0
    %2673 = vmatpush1.msra.mxu0 %v2411
    %2674 = vmatprep.subr.mxu0 0.0
    %2675 = vmatpush1.msra.mxu0 %v2412
    %2676 = vmatprep.subr.mxu0 0.0
    %2677 = vmatpush1.msra.mxu0 %v2413
    %2678 = vmatprep.subr.mxu0 0.0
    %2679 = vmatpush1.msra.mxu0 %v2414
    %2680 = vmatprep.subr.mxu0 0.0
    %2681 = vmatpush1.msra.mxu0 %v2415
    %2682 = vmatprep.subr.mxu0 0.0
    %2683 = vmatpush1.msra.mxu0 %v2416
    %2684 = vmatprep.subr.mxu0 0.0
    %2685 = vmatpush1.msra.mxu0 %v2417
    %2686 = vmatprep.subr.mxu0 0.0
    %2687 = vmatpush1.msra.mxu0 %v2418
    %2688 = vmatprep.subr.mxu0 0.0
    %2689 = vmatpush1.msra.mxu0 %v2419
    %2690 = vmatprep.subr.mxu0 0.0
    %2691 = vmatpush1.msra.mxu0 %v2420
    %2692 = vmatprep.subr.mxu0 0.0
    %2693 = vmatpush1.msra.mxu0 0.0
    %2694 = vmatprep.subr.mxu0 0.0
    %2695 = vmatpush1.msra.mxu0 0.0
    %2696 = vmatprep.subr.mxu0 0.0
    %2697 = vmatpush1.msra.mxu0 0.0
    %2698 = vmatprep.subr.mxu0 0.0
    %2699 = vmatpush1.msra.mxu0 0.0
    %2700 = vmatprep.subr.mxu0 0.0
    %2701 = vmatpush1.msra.mxu0 0.0
    %2702 = vmatprep.subr.mxu0 0.0
    %2703 = vmatpush1.msra.mxu0 0.0
    %2704 = vmatprep.subr.mxu0 0.0
    %2705 = vmatpush1.msra.mxu0 0.0
    %2706 = vmatprep.mubr.f32.mxu0 %v2604
    %2707 = vmatmul.mubr.f32.gmra.mrb[0].mxu0 %v2527
    %v2708 = vpop.f32.mrb[0].mxu0
    %v2709 = vadd.f32 0.0, %v2708
    %v2710 = vpop.f32.mrb[0].mxu0
    %2711 = vmatprep.mubr.f32.mxu0 %v2607
    %2712 = vmatmul.mubr.f32.gmra.mrb[0].mxu0 %v2533
    %v2713 = vpop.f32.mrb[0].mxu0
    %v2714 = vadd.f32 0.0, %v2713
    %v2715 = vpop.f32.mrb[0].mxu0
    %2716 = vmatprep.mubr.f32.mxu0 %v2610
    %2717 = vmatmul.mubr.f32.gmra.mrb[0].mxu0 %v2539
    %v2718 = vpop.f32.mrb[0].mxu0
    %v2719 = vadd.f32 0.0, %v2718
    %v2720 = vpop.f32.mrb[0].mxu0
    %2721 = vmatprep.mubr.f32.mxu0 %v2613
    %2722 = vmatmul.mubr.f32.gmra.mrb[0].mxu0 %v2545
    %v2723 = vpop.f32.mrb[0].mxu0
    %v2724 = vadd.f32 0.0, %v2723
    %v2725 = vpop.f32.mrb[0].mxu0
    %2726 = vmatprep.mubr.f32.mxu0 %v2616
    %2727 = vmatmul.mubr.f32.gmra.mrb[0].mxu0 %v2551
    %v2728 = vpop.f32.mrb[0].mxu0
    %v2729 = vadd.f32 0.0, %v2728
    %v2730 = vpop.f32.mrb[0].mxu0
    %2731 = vmatprep.mubr.f32.mxu0 %v2619
    %2732 = vmatmul.mubr.f32.gmra.mrb[0].mxu0 %v2557
    %v2733 = vpop.f32.mrb[0].mxu0
    %v2734 = vadd.f32 0.0, %v2733
    %v2735 = vpop.f32.mrb[0].mxu0
    %2736 = vmatprep.mubr.f32.mxu0 %v2622
    %2737 = vmatmul.mubr.f32.gmra.mrb[0].mxu0 %v2563
    %v2738 = vpop.f32.mrb[0].mxu0
    %v2739 = vadd.f32 0.0, %v2738
    %v2740 = vpop.f32.mrb[0].mxu0
    %2741 = vmatprep.mubr.f32.mxu0 %v2625
    %2742 = vmatmul.mubr.f32.gmra.mrb[0].mxu0 %v2569
    %v2743 = vpop.f32.mrb[0].mxu0
    %v2744 = vadd.f32 0.0, %v2743
    %v2745 = vpop.f32.mrb[0].mxu0
    %2746 = vmatprep.mubr.f32.mxu0 %v2628
    %2747 = vmatmul.mubr.f32.gmra.mrb[0].mxu0 %v2575
    %v2748 = vpop.f32.mrb[0].mxu0
    %v2749 = vadd.f32 0.0, %v2748
    %v2750 = vpop.f32.mrb[0].mxu0
    %2751 = vmatprep.mubr.f32.mxu0 %v2631
    %2752 = vmatmul.mubr.f32.gmra.mrb[0].mxu0 %v2581
    %v2753 = vpop.f32.mrb[0].mxu0
    %v2754 = vadd.f32 0.0, %v2753
    %v2755 = vpop.f32.mrb[0].mxu0
    %2756 = vmatprep.mubr.f32.mxu0 %v2634
    %2757 = vmatmul.mubr.f32.gmra.mrb[0].mxu0 %v2587
    %v2758 = vpop.f32.mrb[0].mxu0
    %v2759 = vadd.f32 0.0, %v2758
    %v2760 = vpop.f32.mrb[0].mxu0
    %2761 = vmatprep.mubr.f32.mxu0 %v2637
    %2762 = vmatmul.mubr.f32.gmra.mrb[0].mxu0 %v2593
    %v2763 = vpop.f32.mrb[0].mxu0
    %v2764 = vadd.f32 0.0, %v2763
    %v2765 = vpop.f32.mrb[0].mxu0
    %2766 = vmatprep.mubr.f32.mxu0 %v2640
    %2767 = vmatmul.mubr.f32.gmra.mrb[0].mxu0 %v2599
    %v2768 = vpop.f32.mrb[0].mxu0
    %v2769 = vadd.f32 0.0, %v2768
    %v2770 = vpop.f32.mrb[0].mxu0
    %2771 = vdwg.mxu0
    %v2772 = vadd.f32 %v2148, %v2709
    %v2773 = vadd.f32 %v2149, %v2714
    %v2774 = vadd.f32 %v2150, %v2719
    %v2775 = vadd.f32 %v2151, %v2724
    %v2776 = vadd.f32 %v2152, %v2729
    %v2777 = vadd.f32 %v2153, %v2734
    %v2778 = vadd.f32 %v2154, %v2739
    %v2779 = vadd.f32 %v2155, %v2744
    %v2780 = vadd.f32 %v2156, %v2749
    %v2781 = vadd.f32 %v2157, %v2754
    %v2782 = vadd.f32 %v2158, %v2759
    %v2783 = vadd.f32 %v2159, %v2764
    %v2784 = vadd.f32 %v2160, %v2769
    %v2785 = vmax.f32 %v2772, 0.6
    %v2786 = vmax.f32 %v2773, 0.6
    %v2787 = vmax.f32 %v2774, 0.6
    %v2788 = vmax.f32 %v2775, 0.6
    %v2789 = vmax.f32 %v2776, 0.6
    %v2790 = vmax.f32 %v2777, 0.6
    %v2791 = vmax.f32 %v2778, 0.6
    %v2792 = vmax.f32 %v2779, 0.6
    %v2793 = vmax.f32 %v2780, 0.6
    %v2794 = vmax.f32 %v2781, 0.6
    %v2795 = vmax.f32 %v2782, 0.6
    %v2796 = vmax.f32 %v2783, 0.6
    %v2797 = vmax.f32 %v2784, 0.6
    %v2798 = vmin.f32 %v2785, 0.8
    %v2799 = vmin.f32 %v2786, 0.8
    %v2800 = vmin.f32 %v2787, 0.8
    %v2801 = vmin.f32 %v2788, 0.8
    %v2802 = vmin.f32 %v2789, 0.8
    %v2803 = vmin.f32 %v2790, 0.8
    %v2804 = vmin.f32 %v2791, 0.8
    %v2805 = vmin.f32 %v2792, 0.8
    %v2806 = vmin.f32 %v2793, 0.8
    %v2807 = vmin.f32 %v2794, 0.8
    %v2808 = vmin.f32 %v2795, 0.8
    %v2809 = vmin.f32 %v2796, 0.8
    %v2810 = vmin.f32 %v2797, 0.8
    %vm2811 = vcmask 818176
    %2812 = vst.msk [vmem:[%s3] sm:$0xff] %vm2811, %v2798
    %2813 = vst.msk [vmem:[%s3 + $0x8] sm:$0xff] %vm2811, %v2799
    %2814 = vst.msk [vmem:[%s3 + $0x10] sm:$0xff] %vm2811, %v2800
    %2815 = vst.msk [vmem:[%s3 + $0x18] sm:$0xff] %vm2811, %v2801
    %2816 = vst.msk [vmem:[%s3 + $0x20] sm:$0xff] %vm2811, %v2802
    %2817 = vst.msk [vmem:[%s3 + $0x28] sm:$0xff] %vm2811, %v2803
    %2818 = vst.msk [vmem:[%s3 + $0x30] sm:$0xff] %vm2811, %v2804
    %2819 = vst.msk [vmem:[%s3 + $0x38] sm:$0xff] %vm2811, %v2805
    %2820 = vst.msk [vmem:[%s3 + $0x40] sm:$0xff] %vm2811, %v2806
    %2821 = vst.msk [vmem:[%s3 + $0x48] sm:$0xff] %vm2811, %v2807
    %2822 = vst.msk [vmem:[%s3 + $0x50] sm:$0xff] %vm2811, %v2808
    %2823 = vst.msk [vmem:[%s3 + $0x58] sm:$0xff] %vm2811, %v2809
    %vm2824 = vcmask 814080
    %2825 = vst.msk [vmem:[%s3 + $0x60] sm:$0xf] %vm2824, %v2810
    // Predicated region
    $region22: #{conv_clamp.1} parent=1 // pred_check
      _
    $region23: #{conv_clamp.1} parent=1 // pred_check_branch
      %2827 = sbr.rel (0) target = $region25
    $region24: #{conv_clamp.1} parent=1 // pred_region
      _
    $region25: #{conv_clamp.1} parent=1 // pred_fallthru
      _
    // Predicated region
    $region26: #{conv_clamp.1} parent=1 // pred_check
      _
    $region27: #{conv_clamp.1} parent=1 // pred_check_branch
      %2829 = sbr.rel (0) target = $region29
    $region28: #{conv_clamp.1} parent=1 // pred_region
      _
    $region29: #{conv_clamp.1} parent=1 // pred_fallthru
      _
    %2830 = vsyncpa [#allocation4], 1
    %2831 = vsyncpa [#allocation5], 1

</llo_original>
